<compile_context>
chip_gen: v5e
topology: v5e:2x2
jax: 0.10.0
libtpu: 0.0.40
codegen_flags: <defaults>
</compile_context>

<pallas_src>
import functools

import jax
import jax.numpy as jnp
import numpy as np
from jax.experimental import pallas as pl
from jax.experimental.pallas import tpu as pltpu

BN_EPS = 1e-5


# ----------------------------------------------------------------------------
# Activations
# ----------------------------------------------------------------------------
def _mish_kernel(x):
    """In-kernel Mish with one EUP transcendental:
    mish(x) = x * tanh(softplus(x));  with t = 1 + exp(x):
    tanh(log(t)) = (t^2 - 1) / (t^2 + 1)."""
    t = 1.0 + jnp.exp(jnp.minimum(x, 30.0))   # clamp: for x >= 30 the ratio is ~1
    t2 = t * t
    return x * (t2 - 1.0) * pl.reciprocal(t2 + 1.0, approx=True)


def _mish_ref(x):
    # reference (pure JAX): numerically-stable softplus + tanh
    sp = jnp.maximum(x, 0.0) + jnp.log1p(jnp.exp(-jnp.abs(x)))
    return x * jnp.tanh(sp)


# ----------------------------------------------------------------------------
# Shared conv core: zero-pad into a VMEM scratch, pack taps into one im2col
# buffer, run ONE bf16 MXU contraction with K = 9*C.
# ----------------------------------------------------------------------------
def _im2col_conv3x3(x, w_ref, xp_s, xcol_s, H, W, C):
    """x: (H, W, C) f32 value.  w_ref: (9*C, Cout) bf16 (BN scale folded in).
    Returns conv3x3(x, w) as a (H*W, Cout) f32 value."""
    # zero-pad the input into VMEM scratch (no wrapper-side jnp.pad / HBM copy)
    xp_s[...] = jnp.zeros(xp_s.shape, xp_s.dtype)
    xp_s[1:1 + H, 1:1 + W, :] = x
    # pack the 9 taps into a single (H*W, 9*C) bf16 im2col buffer
    for kh in range(3):
        for kw in range(3):
            t = kh * 3 + kw
            patch = xp_s[kh:kh + H, kw:kw + W, :]              # (H, W, C) f32
            xcol_s[:, t * C:(t + 1) * C] = patch.reshape(H * W, C).astype(xcol_s.dtype)
    # single MXU contraction, bf16 operands, f32 accumulation
    return jnp.dot(xcol_s[...], w_ref[...], preferred_element_type=jnp.float32)


# ----------------------------------------------------------------------------
# Pallas kernels (one batch element per grid step)
# ----------------------------------------------------------------------------
def _conv1_kernel(x_ref, w_ref, b_ref, o_ref, xp_s, xcol_s, *, H, W, C):
    """conv3x3 (BN scale folded into w) + bias + Mish."""
    y = _im2col_conv3x3(x_ref[0], w_ref, xp_s, xcol_s, H, W, C)
    y = _mish_kernel(y + b_ref[...])
    o_ref[0] = y.reshape(H, W, -1).astype(o_ref.dtype)


def _conv2_fused_kernel(x_ref, w_ref, b_ref, xs_ref, *rest, H, W, C, shortcut_conv):
    """conv3x3 (BN folded) + bias, plus fused shortcut (1x1 conv + bias, or identity),
    residual add and final Mish — all in one kernel."""
    if shortcut_conv:
        ws_ref, bs_ref, o_ref, xp_s, xcol_s = rest
    else:
        o_ref, xp_s, xcol_s = rest

    y = _im2col_conv3x3(x_ref[0], w_ref, xp_s, xcol_s, H, W, C) + b_ref[...]

    if shortcut_conv:
        xs = xs_ref[0].reshape(H * W, -1).astype(jnp.bfloat16)
        y = y + jnp.dot(xs, ws_ref[...], preferred_element_type=jnp.float32) + bs_ref[...]
    else:
        y = y + xs_ref[0].reshape(H * W, -1)

    y = _mish_kernel(y)
    o_ref[0] = y.reshape(H, W, -1).astype(o_ref.dtype)


# ----------------------------------------------------------------------------
# Pallas wrappers
# ----------------------------------------------------------------------------
_COMPILER_PARAMS = pltpu.CompilerParams(
    dimension_semantics=("parallel",),
    vmem_limit_bytes=32 * 1024 * 1024,
)


def conv3x3_bn_mish(x, w, b):
    """x: (N, H, W, Cin) f32; w: (9*Cin, Cout) bf16 (scale folded); b: (1, Cout) f32."""
    N, H, W, Cin = x.shape
    Cout = w.shape[-1]
    return pl.pallas_call(
        functools.partial(_conv1_kernel, H=H, W=W, C=Cin),
        out_shape=jax.ShapeDtypeStruct((N, H, W, Cout), jnp.float32),
        grid=(N,),
        in_specs=[
            pl.BlockSpec((1, H, W, Cin), lambda n: (n, 0, 0, 0)),
            pl.BlockSpec((9 * Cin, Cout), lambda n: (0, 0)),
            pl.BlockSpec((1, Cout), lambda n: (0, 0)),
        ],
        out_specs=pl.BlockSpec((1, H, W, Cout), lambda n: (n, 0, 0, 0)),
        scratch_shapes=[
            pltpu.VMEM((H + 2, W + 2, Cin), jnp.float32),    # zero-padded input
            pltpu.VMEM((H * W, 9 * Cin), jnp.bfloat16),      # im2col buffer
        ],
        compiler_params=_COMPILER_PARAMS,
    )(x, w, b)


def conv3x3_bn_shortcut_mish(x, w, b, xs, ws=None, bs=None):
    """Second conv of the block, fused with shortcut + add + Mish.
    x: (N, H, W, C) f32; w: (9*C, Cout) bf16; b: (1, Cout) f32;
    xs: shortcut input (N, H, W, Cs) f32; ws: (Cs, Cout) bf16 or None (identity)."""
    N, H, W, C = x.shape
    Cout = w.shape[-1]
    Cs = xs.shape[-1]
    shortcut_conv = ws is not None

    in_specs = [
        pl.BlockSpec((1, H, W, C), lambda n: (n, 0, 0, 0)),
        pl.BlockSpec((9 * C, Cout), lambda n: (0, 0)),
        pl.BlockSpec((1, Cout), lambda n: (0, 0)),
        pl.BlockSpec((1, H, W, Cs), lambda n: (n, 0, 0, 0)),
    ]
    args = [x, w, b, xs]
    if shortcut_conv:
        in_specs += [
            pl.BlockSpec((Cs, Cout), lambda n: (0, 0)),
            pl.BlockSpec((1, Cout), lambda n: (0, 0)),
        ]
        args += [ws, bs]

    return pl.pallas_call(
        functools.partial(_conv2_fused_kernel, H=H, W=W, C=C,
                          shortcut_conv=shortcut_conv),
        out_shape=jax.ShapeDtypeStruct((N, H, W, Cout), jnp.float32),
        grid=(N,),
        in_specs=in_specs,
        out_specs=pl.BlockSpec((1, H, W, Cout), lambda n: (n, 0, 0, 0)),
        scratch_shapes=[
            pltpu.VMEM((H + 2, W + 2, C), jnp.float32),
            pltpu.VMEM((H * W, 9 * C), jnp.bfloat16),
        ],
        compiler_params=_COMPILER_PARAMS,
    )(*args)


# ----------------------------------------------------------------------------
# ResidualBlock forward (glue + Pallas compute)
# ----------------------------------------------------------------------------
def residual_block_forward(x_nchw, params, stride=1):
    x = jnp.transpose(x_nchw, (0, 2, 3, 1)).astype(jnp.float32)   # NCHW -> NHWC
    N, H, W, Cin = x.shape
    Cout = params["bias1"].shape[-1]

    # left branch, first conv: conv3x3 + (folded) BN + Mish
    out1 = conv3x3_bn_mish(x, params["w1_k"], params["bias1"])

    if stride > 1:
        # stride-s conv == stride-1 conv subsampled (exact; elementwise ops commute)
        out1 = out1[:, ::stride, ::stride, :]
        xs = x[:, ::stride, ::stride, :]
    else:
        xs = x

    # left branch second conv + shortcut + add + Mish, fused in one kernel
    if stride != 1 or Cin != Cout:
        out = conv3x3_bn_shortcut_mish(out1, params["w2_k"], params["bias2"],
                                       xs, params["w3_k"], params["bias3"])
    else:
        out = conv3x3_bn_shortcut_mish(out1, params["w2_k"], params["bias2"], xs)

    return jnp.transpose(out, (0, 3, 1, 2))                        # NHWC -> NCHW


# ----------------------------------------------------------------------------
# Parameter construction (deterministic) and a pure-JAX reference
# ----------------------------------------------------------------------------
def make_params(key, inchannel, outchannel):
    ks = jax.random.split(key, 6)

    def bn_fold(k, c):
        kg, kb, km, kv = jax.random.split(k, 4)
        gamma = jax.random.normal(kg, (c,), jnp.float32) * 0.1 + 1.0
        beta = jax.random.normal(kb, (c,), jnp.float32) * 0.1
        mean = jax.random.normal(km, (c,), jnp.float32) * 0.1
        var = jax.random.uniform(kv, (c,), jnp.float32, 0.5, 1.5)
        scale = gamma / jnp.sqrt(var + BN_EPS)
        bias = beta - mean * scale
        return scale, bias

    w1 = jax.random.normal(ks[0], (outchannel, inchannel, 3, 3), jnp.float32) * 0.1
    w2 = jax.random.normal(ks[1], (outchannel, outchannel, 3, 3), jnp.float32) * 0.1
    w3 = jax.random.normal(ks[2], (outchannel, inchannel, 1, 1), jnp.float32) * 0.1
    s1, b1 = bn_fold(ks[3], outchannel)
    s2, b2 = bn_fold(ks[4], outchannel)
    s3, b3 = bn_fold(ks[5], outchannel)

    def fold3x3(w, scale):
        # OIHW -> rows ordered (kh*3+kw)*Cin + ci, cols = Cout; fold BN scale; bf16 for MXU
        cout, cin = w.shape[0], w.shape[1]
        wk = jnp.transpose(w, (2, 3, 1, 0)).reshape(9 * cin, cout)
        return (wk * scale[None, :]).astype(jnp.bfloat16)

    return {
        # reference (unfolded, f32, PyTorch OIHW layout)
        "w1": w1, "w2": w2, "w3": w3,
        "s1": s1, "b1": b1, "s2": s2, "b2": b2, "s3": s3, "b3": b3,
        # kernel parameters: BN scale folded into bf16 weights, bias kept separate
        "w1_k": fold3x3(w1, s1),
        "w2_k": fold3x3(w2, s2),
        "w3_k": (jnp.transpose(w3[:, :, 0, 0], (1, 0)) * s3[None, :]).astype(jnp.bfloat16),
        "bias1": b1[None, :], "bias2": b2[None, :], "bias3": b3[None, :],
    }


def reference_forward(x_nchw, params, stride=1):
    dn = ("NCHW", "OIHW", "NCHW")
    conv = lambda x, w, s, pad: jax.lax.conv_general_dilated(
        x, w, (s, s), pad, dimension_numbers=dn)
    bn = lambda y, s, b: y * s[None, :, None, None] + b[None, :, None, None]

    y = conv(x_nchw, params["w1"], stride, [(1, 1), (1, 1)])
    y = _mish_ref(bn(y, params["s1"], params["b1"]))
    y = conv(y, params["w2"], 1, [(1, 1), (1, 1)])
    y = bn(y, params["s2"], params["b2"])

    Cin, Cout = params["w1"].shape[1], params["w1"].shape[0]
    if stride != 1 or Cin != Cout:
        sc = conv(x_nchw, params["w3"], stride, [(0, 0), (0, 0)])
        sc = bn(sc, params["s3"], params["b3"])
    else:
        sc = x_nchw
    return _mish_ref(y + sc)


if __name__ == "__main__":
    key = jax.random.PRNGKey(0)

    configs = [
        # (N, Cin, Cout, H, W, stride)
        (2, 4, 8, 16, 16, 1),   # projection shortcut (1x1 conv + BN), fused in-kernel
        (2, 8, 8, 16, 16, 1),   # identity shortcut
        (2, 4, 8, 16, 16, 2),   # strided block (projection shortcut)
    ]

    for i, (N, Cin, Cout, H, W, stride) in enumerate(configs):
        kx, kp = jax.random.split(jax.random.fold_in(key, i))
        x = jax.random.normal(kx, (N, Cin, H, W), jnp.float32)
        params = make_params(kp, Cin, Cout)

        out = jax.block_until_ready(residual_block_forward(x, params, stride=stride))
        ref = jax.block_until_ready(reference_forward(x, params, stride=stride))

        assert out.shape == ref.shape
        # tolerance accounts for bf16 MXU operands + approx reciprocal in Mish
        np.testing.assert_allclose(np.asarray(out), np.asarray(ref),
                                   rtol=2e-2, atol=2e-2)

    print("KERNEL_OK")
</pallas_src>

<mosaic_0001>
module attributes {stable_mosaic.version = 11 : i64} {
  func.func @_conv1_kernel(%arg0: i32, %arg1: memref<1x16x16x4xf32, #tpu.memory_space<vmem>>, %arg2: memref<36x8xbf16, #tpu.memory_space<vmem>>, %arg3: memref<1x8xf32, #tpu.memory_space<vmem>>, %arg4: memref<1x16x16x8xf32, #tpu.memory_space<vmem>>, %arg5: memref<18x18x4xf32, #tpu.memory_space<vmem>>, %arg6: memref<256x36xbf16, #tpu.memory_space<vmem>>) attributes {dimension_semantics = [#tpu.dimension_semantics<parallel>], iteration_bounds = array<i64: 2>, scalar_prefetch = 0 : i64, scratch_operands = 2 : i64, tpu.core_type = #tpu.core_type<tc>, window_params = [{transform_indices = @transform_0, window_bounds = array<i64: 1, 16, 16, 4>}, {pipeline_mode = #tpu.pipeline_mode<synchronous>, transform_indices = @transform_1, window_bounds = array<i64: 36, 8>}, {pipeline_mode = #tpu.pipeline_mode<synchronous>, transform_indices = @transform_2, window_bounds = array<i64: 1, 8>}, {transform_indices = @transform_3, window_bounds = array<i64: 1, 16, 16, 8>}]} {
    %c0 = arith.constant 0 : index
    %c0_0 = arith.constant 0 : index
    %c0_1 = arith.constant 0 : index
    %c0_2 = arith.constant 0 : index
    %0 = vector.load %arg1[%c0, %c0_0, %c0_1, %c0_2] : memref<1x16x16x4xf32, #tpu.memory_space<vmem>>, vector<1x16x16x4xf32>
    %1 = vector.shape_cast %0 : vector<1x16x16x4xf32> to vector<16x16x4xf32>
    %cst = arith.constant 0.000000e+00 : f32
    %2 = vector.broadcast %cst : f32 to vector<18x18x4xf32>
    %c0_3 = arith.constant 0 : index
    %c0_4 = arith.constant 0 : index
    %c0_5 = arith.constant 0 : index
    %3 = vector.load %arg5[%c0_3, %c0_4, %c0_5] : memref<18x18x4xf32, #tpu.memory_space<vmem>>, vector<18x18x4xf32>
    tpu.vector_store %arg5[%c0_3, %c0_4, %c0_5], %2 {strides = array<i32>} : memref<18x18x4xf32, #tpu.memory_space<vmem>>, vector<18x18x4xf32>,
    %c1 = arith.constant 1 : index
    %c1_6 = arith.constant 1 : index
    %c0_7 = arith.constant 0 : index
    %4 = vector.load %arg5[%c1, %c1_6, %c0_7] : memref<18x18x4xf32, #tpu.memory_space<vmem>>, vector<16x16x4xf32>
    tpu.vector_store %arg5[%c1, %c1_6, %c0_7], %1 {strides = array<i32>} : memref<18x18x4xf32, #tpu.memory_space<vmem>>, vector<16x16x4xf32>,
    %c0_8 = arith.constant 0 : index
    %c0_9 = arith.constant 0 : index
    %c0_10 = arith.constant 0 : index
    %5 = vector.load %arg5[%c0_8, %c0_9, %c0_10] : memref<18x18x4xf32, #tpu.memory_space<vmem>>, vector<16x16x4xf32>
    %6 = vector.shape_cast %5 : vector<16x16x4xf32> to vector<256x4xf32>
    %7 = arith.truncf %6 : vector<256x4xf32> to vector<256x4xbf16>
    %c0_11 = arith.constant 0 : index
    %c0_12 = arith.constant 0 : index
    %8 = vector.load %arg6[%c0_11, %c0_12] : memref<256x36xbf16, #tpu.memory_space<vmem>>, vector<256x4xbf16>
    tpu.vector_store %arg6[%c0_11, %c0_12], %7 {strides = array<i32>} : memref<256x36xbf16, #tpu.memory_space<vmem>>, vector<256x4xbf16>,
    %c0_13 = arith.constant 0 : index
    %c1_14 = arith.constant 1 : index
    %c0_15 = arith.constant 0 : index
    %9 = vector.load %arg5[%c0_13, %c1_14, %c0_15] : memref<18x18x4xf32, #tpu.memory_space<vmem>>, vector<16x16x4xf32>
    %10 = vector.shape_cast %9 : vector<16x16x4xf32> to vector<256x4xf32>
    %11 = arith.truncf %10 : vector<256x4xf32> to vector<256x4xbf16>
    %c0_16 = arith.constant 0 : index
    %c4 = arith.constant 4 : index
    %12 = vector.load %arg6[%c0_16, %c4] : memref<256x36xbf16, #tpu.memory_space<vmem>>, vector<256x4xbf16>
    tpu.vector_store %arg6[%c0_16, %c4], %11 {strides = array<i32>} : memref<256x36xbf16, #tpu.memory_space<vmem>>, vector<256x4xbf16>,
    %c0_17 = arith.constant 0 : index
    %c2 = arith.constant 2 : index
    %c0_18 = arith.constant 0 : index
    %13 = vector.load %arg5[%c0_17, %c2, %c0_18] : memref<18x18x4xf32, #tpu.memory_space<vmem>>, vector<16x16x4xf32>
    %14 = vector.shape_cast %13 : vector<16x16x4xf32> to vector<256x4xf32>
    %15 = arith.truncf %14 : vector<256x4xf32> to vector<256x4xbf16>
    %c0_19 = arith.constant 0 : index
    %c8 = arith.constant 8 : index
    %16 = vector.load %arg6[%c0_19, %c8] : memref<256x36xbf16, #tpu.memory_space<vmem>>, vector<256x4xbf16>
    tpu.vector_store %arg6[%c0_19, %c8], %15 {strides = array<i32>} : memref<256x36xbf16, #tpu.memory_space<vmem>>, vector<256x4xbf16>,
    %c1_20 = arith.constant 1 : index
    %c0_21 = arith.constant 0 : index
    %c0_22 = arith.constant 0 : index
    %17 = vector.load %arg5[%c1_20, %c0_21, %c0_22] : memref<18x18x4xf32, #tpu.memory_space<vmem>>, vector<16x16x4xf32>
    %18 = vector.shape_cast %17 : vector<16x16x4xf32> to vector<256x4xf32>
    %19 = arith.truncf %18 : vector<256x4xf32> to vector<256x4xbf16>
    %c0_23 = arith.constant 0 : index
    %c12 = arith.constant 12 : index
    %20 = vector.load %arg6[%c0_23, %c12] : memref<256x36xbf16, #tpu.memory_space<vmem>>, vector<256x4xbf16>
    tpu.vector_store %arg6[%c0_23, %c12], %19 {strides = array<i32>} : memref<256x36xbf16, #tpu.memory_space<vmem>>, vector<256x4xbf16>,
    %c1_24 = arith.constant 1 : index
    %c1_25 = arith.constant 1 : index
    %c0_26 = arith.constant 0 : index
    %21 = vector.load %arg5[%c1_24, %c1_25, %c0_26] : memref<18x18x4xf32, #tpu.memory_space<vmem>>, vector<16x16x4xf32>
    %22 = vector.shape_cast %21 : vector<16x16x4xf32> to vector<256x4xf32>
    %23 = arith.truncf %22 : vector<256x4xf32> to vector<256x4xbf16>
    %c0_27 = arith.constant 0 : index
    %c16 = arith.constant 16 : index
    %24 = vector.load %arg6[%c0_27, %c16] : memref<256x36xbf16, #tpu.memory_space<vmem>>, vector<256x4xbf16>
    tpu.vector_store %arg6[%c0_27, %c16], %23 {strides = array<i32>} : memref<256x36xbf16, #tpu.memory_space<vmem>>, vector<256x4xbf16>,
    %c1_28 = arith.constant 1 : index
    %c2_29 = arith.constant 2 : index
    %c0_30 = arith.constant 0 : index
    %25 = vector.load %arg5[%c1_28, %c2_29, %c0_30] : memref<18x18x4xf32, #tpu.memory_space<vmem>>, vector<16x16x4xf32>
    %26 = vector.shape_cast %25 : vector<16x16x4xf32> to vector<256x4xf32>
    %27 = arith.truncf %26 : vector<256x4xf32> to vector<256x4xbf16>
    %c0_31 = arith.constant 0 : index
    %c20 = arith.constant 20 : index
    %28 = vector.load %arg6[%c0_31, %c20] : memref<256x36xbf16, #tpu.memory_space<vmem>>, vector<256x4xbf16>
    tpu.vector_store %arg6[%c0_31, %c20], %27 {strides = array<i32>} : memref<256x36xbf16, #tpu.memory_space<vmem>>, vector<256x4xbf16>,
    %c2_32 = arith.constant 2 : index
    %c0_33 = arith.constant 0 : index
    %c0_34 = arith.constant 0 : index
    %29 = vector.load %arg5[%c2_32, %c0_33, %c0_34] : memref<18x18x4xf32, #tpu.memory_space<vmem>>, vector<16x16x4xf32>
    %30 = vector.shape_cast %29 : vector<16x16x4xf32> to vector<256x4xf32>
    %31 = arith.truncf %30 : vector<256x4xf32> to vector<256x4xbf16>
    %c0_35 = arith.constant 0 : index
    %c24 = arith.constant 24 : index
    %32 = vector.load %arg6[%c0_35, %c24] : memref<256x36xbf16, #tpu.memory_space<vmem>>, vector<256x4xbf16>
    tpu.vector_store %arg6[%c0_35, %c24], %31 {strides = array<i32>} : memref<256x36xbf16, #tpu.memory_space<vmem>>, vector<256x4xbf16>,
    %c2_36 = arith.constant 2 : index
    %c1_37 = arith.constant 1 : index
    %c0_38 = arith.constant 0 : index
    %33 = vector.load %arg5[%c2_36, %c1_37, %c0_38] : memref<18x18x4xf32, #tpu.memory_space<vmem>>, vector<16x16x4xf32>
    %34 = vector.shape_cast %33 : vector<16x16x4xf32> to vector<256x4xf32>
    %35 = arith.truncf %34 : vector<256x4xf32> to vector<256x4xbf16>
    %c0_39 = arith.constant 0 : index
    %c28 = arith.constant 28 : index
    %36 = vector.load %arg6[%c0_39, %c28] : memref<256x36xbf16, #tpu.memory_space<vmem>>, vector<256x4xbf16>
    tpu.vector_store %arg6[%c0_39, %c28], %35 {strides = array<i32>} : memref<256x36xbf16, #tpu.memory_space<vmem>>, vector<256x4xbf16>,
    %c2_40 = arith.constant 2 : index
    %c2_41 = arith.constant 2 : index
    %c0_42 = arith.constant 0 : index
    %37 = vector.load %arg5[%c2_40, %c2_41, %c0_42] : memref<18x18x4xf32, #tpu.memory_space<vmem>>, vector<16x16x4xf32>
    %38 = vector.shape_cast %37 : vector<16x16x4xf32> to vector<256x4xf32>
    %39 = arith.truncf %38 : vector<256x4xf32> to vector<256x4xbf16>
    %c0_43 = arith.constant 0 : index
    %c32 = arith.constant 32 : index
    %40 = vector.load %arg6[%c0_43, %c32] : memref<256x36xbf16, #tpu.memory_space<vmem>>, vector<256x4xbf16>
    tpu.vector_store %arg6[%c0_43, %c32], %39 {strides = array<i32>} : memref<256x36xbf16, #tpu.memory_space<vmem>>, vector<256x4xbf16>,
    %c0_44 = arith.constant 0 : index
    %c0_45 = arith.constant 0 : index
    %41 = vector.load %arg6[%c0_44, %c0_45] : memref<256x36xbf16, #tpu.memory_space<vmem>>, vector<256x36xbf16>
    %c0_46 = arith.constant 0 : index
    %c0_47 = arith.constant 0 : index
    %42 = vector.load %arg2[%c0_46, %c0_47] : memref<36x8xbf16, #tpu.memory_space<vmem>>, vector<36x8xbf16>
    %cst_48 = arith.constant dense<0.000000e+00> : vector<256x8xf32>
    %43 = tpu.matmul %41, %42, %cst_48 {dimension_numbers = #tpu.dot_dimension_numbers<[1], [0], [0], [1], [0, 0, 1, 1], [], []>} : vector<256x36xbf16>, vector<36x8xbf16>, vector<256x8xf32> -> vector<256x8xf32>
    %c0_49 = arith.constant 0 : index
    %c0_50 = arith.constant 0 : index
    %44 = vector.load %arg3[%c0_49, %c0_50] : memref<1x8xf32, #tpu.memory_space<vmem>>, vector<1x8xf32>
    %45 = vector.broadcast %44 : vector<1x8xf32> to vector<256x8xf32>
    %46 = arith.addf %43, %45 : vector<256x8xf32>
    %cst_51 = arith.constant 3.000000e+01 : f32
    %47 = vector.broadcast %cst_51 : f32 to vector<256x8xf32>
    %48 = arith.minimumf %46, %47 : vector<256x8xf32>
    %49 = math.exp %48 : vector<256x8xf32>
    %cst_52 = arith.constant 1.000000e+00 : f32
    %50 = vector.broadcast %cst_52 : f32 to vector<256x8xf32>
    %51 = arith.addf %50, %49 : vector<256x8xf32>
    %52 = arith.mulf %51, %51 : vector<256x8xf32>
    %cst_53 = arith.constant 1.000000e+00 : f32
    %53 = vector.broadcast %cst_53 : f32 to vector<256x8xf32>
    %54 = arith.subf %52, %53 : vector<256x8xf32>
    %55 = arith.mulf %46, %54 : vector<256x8xf32>
    %cst_54 = arith.constant 1.000000e+00 : f32
    %56 = vector.broadcast %cst_54 : f32 to vector<256x8xf32>
    %57 = arith.addf %52, %56 : vector<256x8xf32>
    %58 = tpu.reciprocal %57 {approx = true} : vector<256x8xf32> -> vector<256x8xf32>
    %59 = arith.mulf %55, %58 : vector<256x8xf32>
    %60 = vector.shape_cast %59 : vector<256x8xf32> to vector<16x16x8xf32>
    %c0_55 = arith.constant 0 : index
    %c0_56 = arith.constant 0 : index
    %c0_57 = arith.constant 0 : index
    %c0_58 = arith.constant 0 : index
    %61 = vector.load %arg4[%c0_55, %c0_56, %c0_57, %c0_58] : memref<1x16x16x8xf32, #tpu.memory_space<vmem>>, vector<1x16x16x8xf32>
    %62 = vector.shape_cast %61 : vector<1x16x16x8xf32> to vector<16x16x8xf32>
    %63 = vector.shape_cast %60 : vector<16x16x8xf32> to vector<1x16x16x8xf32>
    tpu.vector_store %arg4[%c0_55, %c0_56, %c0_57, %c0_58], %63 {strides = array<i32>} : memref<1x16x16x8xf32, #tpu.memory_space<vmem>>, vector<1x16x16x8xf32>,
    return
  }
  func.func @transform_0(%arg0: i32) -> (i32, i32, i32, i32) {
    %c0_i32 = arith.constant 0 : i32
    %c0_i32_0 = arith.constant 0 : i32
    %c0_i32_1 = arith.constant 0 : i32
    %c0_i32_2 = arith.constant 0 : i32
    return %arg0, %c0_i32, %c0_i32_0, %c0_i32_1 : i32, i32, i32, i32
  }
  func.func @transform_1(%arg0: i32) -> (i32, i32) {
    %c0_i32 = arith.constant 0 : i32
    %c0_i32_0 = arith.constant 0 : i32
    %c0_i32_1 = arith.constant 0 : i32
    return %c0_i32, %c0_i32_0 : i32, i32
  }
  func.func @transform_2(%arg0: i32) -> (i32, i32) {
    %c0_i32 = arith.constant 0 : i32
    %c0_i32_0 = arith.constant 0 : i32
    %c0_i32_1 = arith.constant 0 : i32
    return %c0_i32, %c0_i32_0 : i32, i32
  }
  func.func @transform_3(%arg0: i32) -> (i32, i32, i32, i32) {
    %c0_i32 = arith.constant 0 : i32
    %c0_i32_0 = arith.constant 0 : i32
    %c0_i32_1 = arith.constant 0 : i32
    %c0_i32_2 = arith.constant 0 : i32
    return %arg0, %c0_i32, %c0_i32_0, %c0_i32_1 : i32, i32, i32, i32
  }
}

</mosaic_0001>

<llo_original>
// kernel: tpu_custom_call.1
$region0: #{tpu_custom_call.1}
  #allocation0 [shape = 'u32[]', space=smem, size = 0x4, offset = 0x4, fixed_abs, tag = 'smem constant byte address 0x4 - core index']
  #allocation1 [shape = 'u32[72,128]{1,0:T(1,128)}', space=vmem, size = 0x9000, scoped, tag = 'internal scratch']
  #allocation2 [shape = 'f32[18,18,4]{2,1,0:T(8,128)}', space=vmem, size = 0x36000, scoped, tag = 'scratch operand']
  #allocation3 [shape = 'bf16[256,36]{1,0:T(8,128)(2,1)}', space=vmem, size = 0x10000, scoped, tag = 'scratch operand']
  %s0 = inlined_call_operand.vmem [shape: f32[2,16,16,4], index: 0, kind: input, shape index: {}]
  %s1 = inlined_call_operand.vmem [shape: bf16[36,8], index: 1, kind: input, shape index: {}]
  %s2 = inlined_call_operand.vmem [shape: f32[1,8], index: 2, kind: input, shape index: {}]
  %s3 = inlined_call_operand.vmem [shape: f32[2,16,16,8], index: 3, kind: output, shape index: {}]
  %s4 = sld [smem:[#allocation0]]
  $region45: #{tpu_custom_call.1} parent=0
    _
  %s6 = ssub.s32 1, %s4
  %s7 = scalar_select 0, %s6, %s4
  loop: start=0, step=1, limit=4
  $region2: #{tpu_custom_call.1} parent=0 // loop_pre_header
    _
  $region3: #{tpu_custom_call.1} parent=0 // loop_header
    %s9 = sphi 0, %s13
    %p10 = scmp.ge.s32.totalorder %s9, 4
    %s19 = sphi 0, %s21
    %s22 = sphi 0, %s19
    %s23 = sphi 0, %s22
    %s39 = sphi 0, %s23
    %s43 = sphi 0, %s43
    %s45 = sphi 0, %s43
    %s46 = sphi 0, %s45
    %s60 = sphi 0, %s46
    %s64 = sphi 0, %s64
    %s66 = sphi 0, %s64
    %s67 = sphi 0, %s66
    %s81 = sphi 0, %s67
    %s87 = sphi 0, %s89
    %s90 = sphi 0, %s87
    %s91 = sphi 0, %s90
    %s107 = sphi 0, %s91
  $region4: #{tpu_custom_call.1} parent=0 // loop_header_branch
    %12 = sbr.rel (%p10) target = $region8
  $region5: #{tpu_custom_call.1} parent=0 // loop_body
    %s14 = ssub.s32 %s9, 1
    %s15 = ssub.s32 %s9, 2
    %s16 = sadd.s32 %s9, 1
    %s17 = ssub.s32 %s9, %s16
    %p18 = scmp.eq.s32.totalorder %s17, 0
    %s20 = sadd.s32 %s19, 1
    %s21 = scalar_select %p18, %s19, %s20
    %p24 = pneg %p18
    %p25 = scmp.eq.s32.totalorder %s9, 1
    %p26 = por %p24, %p25
    %p27 = scmp.ne.s32.totalorder %s19, %s22
    %p28 = scmp.eq.s32.totalorder %s9, 0
    %p29 = por %p27, %p28
    %p30 = scmp.ne.s32.totalorder %s19, %s22
    %p31 = scmp.eq.s32.totalorder %s14, 1
    %p32 = por %p30, %p31
    %p33 = scmp.ne.s32.totalorder %s22, %s23
    %p34 = scmp.eq.s32.totalorder %s14, 0
    %p35 = por %p33, %p34
    %p36 = scmp.ne.s32.totalorder %s22, %s23
    %p37 = scmp.eq.s32.totalorder %s15, 1
    %p38 = por %p36, %p37
    %p40 = scmp.ne.s32.totalorder %s23, %s39
    %p41 = scmp.eq.s32.totalorder %s15, 0
    %p42 = por %p40, %p41
    %s44 = sadd.s32 %s43, 1
    %p47 = scmp.eq.s32.totalorder %s9, 1
    %p48 = scmp.ne.s32.totalorder %s43, %s45
    %p49 = scmp.eq.s32.totalorder %s9, 0
    %p50 = por %p48, %p49
    %p51 = scmp.ne.s32.totalorder %s43, %s45
    %p52 = scmp.eq.s32.totalorder %s14, 1
    %p53 = por %p51, %p52
    %p54 = scmp.ne.s32.totalorder %s45, %s46
    %p55 = scmp.eq.s32.totalorder %s14, 0
    %p56 = por %p54, %p55
    %p57 = scmp.ne.s32.totalorder %s45, %s46
    %p58 = scmp.eq.s32.totalorder %s15, 1
    %p59 = por %p57, %p58
    %p61 = scmp.ne.s32.totalorder %s46, %s60
    %p62 = scmp.eq.s32.totalorder %s15, 0
    %p63 = por %p61, %p62
    %s65 = sadd.s32 %s64, 1
    %p68 = scmp.eq.s32.totalorder %s9, 1
    %p69 = scmp.ne.s32.totalorder %s64, %s66
    %p70 = scmp.eq.s32.totalorder %s9, 0
    %p71 = por %p69, %p70
    %p72 = scmp.ne.s32.totalorder %s64, %s66
    %p73 = scmp.eq.s32.totalorder %s14, 1
    %p74 = por %p72, %p73
    %p75 = scmp.ne.s32.totalorder %s66, %s67
    %p76 = scmp.eq.s32.totalorder %s14, 0
    %p77 = por %p75, %p76
    %p78 = scmp.ne.s32.totalorder %s66, %s67
    %p79 = scmp.eq.s32.totalorder %s15, 1
    %p80 = por %p78, %p79
    %p82 = scmp.ne.s32.totalorder %s67, %s81
    %p83 = scmp.eq.s32.totalorder %s15, 0
    %p84 = por %p82, %p83
    %s85 = ssub.s32 %s9, %s16
    %p86 = scmp.eq.s32.totalorder %s85, 0
    %s88 = sadd.s32 %s87, 1
    %s89 = scalar_select %p86, %s87, %s88
    %p92 = pneg %p86
    %p93 = scmp.eq.s32.totalorder %s9, 1
    %p94 = por %p92, %p93
    %p95 = scmp.ne.s32.totalorder %s87, %s90
    %p96 = scmp.eq.s32.totalorder %s9, 0
    %p97 = por %p95, %p96
    %p98 = scmp.ne.s32.totalorder %s87, %s90
    %p99 = scmp.eq.s32.totalorder %s14, 1
    %p100 = por %p98, %p99
    %p101 = scmp.ne.s32.totalorder %s90, %s91
    %p102 = scmp.eq.s32.totalorder %s14, 0
    %p103 = por %p101, %p102
    %p104 = scmp.ne.s32.totalorder %s90, %s91
    %p105 = scmp.eq.s32.totalorder %s15, 1
    %p106 = por %p104, %p105
    %p108 = scmp.ne.s32.totalorder %s91, %s107
    %p109 = scmp.eq.s32.totalorder %s15, 0
    %p110 = por %p108, %p109
    %p111 = scmp.le.s32.totalorder 1, %s9
    %p112 = scmp.lt.s32.totalorder %s9, 3
    %p113 = pnand %p111, %p112
    %p114 = pneg %p113
    // Predicated region
    $region9: #{tpu_custom_call.1} parent=5 // pred_check
      _
    $region10: #{tpu_custom_call.1} parent=5 // pred_check_branch
      %116 = sbr.rel (%p113) target = $region12
    $region11: #{tpu_custom_call.1} parent=5 // pred_region
      %s117 = ssub.s32 %s9, 1
      // Predicated region
      $region13: #{tpu_custom_call.1} parent=11 // pred_check
        %p118 = pneg %p56
      $region14: #{tpu_custom_call.1} parent=11 // pred_check_branch
        %120 = sbr.rel (%p118) target = $region16
      $region15: #{tpu_custom_call.1} parent=11 // pred_region
        _
      $region16: #{tpu_custom_call.1} parent=11 // pred_fallthru
        _
      // Predicated region
      $region17: #{tpu_custom_call.1} parent=11 // pred_check
        %p121 = pneg %p77
      $region18: #{tpu_custom_call.1} parent=11 // pred_check_branch
        %123 = sbr.rel (%p121) target = $region20
      $region19: #{tpu_custom_call.1} parent=11 // pred_region
        _
      $region20: #{tpu_custom_call.1} parent=11 // pred_fallthru
        _
    $region12: #{tpu_custom_call.1} parent=5 // pred_fallthru
      _
    %p124 = scmp.lt.s32.totalorder %s9, 2
    // Predicated region
    $region21: #{tpu_custom_call.1} parent=5 // pred_check
      %p125 = pneg %p124
    $region22: #{tpu_custom_call.1} parent=5 // pred_check_branch
      %127 = sbr.rel (%p125) target = $region24
    $region23: #{tpu_custom_call.1} parent=5 // pred_region
      // Predicated region
      $region25: #{tpu_custom_call.1} parent=23 // pred_check
        %p128 = pneg %p29
      $region26: #{tpu_custom_call.1} parent=23 // pred_check_branch
        %130 = sbr.rel (%p128) target = $region28
      $region27: #{tpu_custom_call.1} parent=23 // pred_region
        %p131 = scmp.lt.s32.totalorder %s9, 1
        %s132 = scalar_select %p131, %s9, 1
        %s133 = smul.addr %s132, 32
        %s134 = smul.addr %s133, 8
        %s135 = scalar_lea.vmem %s0, %s134
      $region28: #{tpu_custom_call.1} parent=23 // pred_fallthru
        _
    $region24: #{tpu_custom_call.1} parent=5 // pred_fallthru
      _
    %p136 = scmp.le.s32.totalorder 1, %s9
    %p137 = scmp.lt.s32.totalorder %s9, 3
    %p138 = pnand %p136, %p137
    %p139 = pneg %p138
    // Predicated region
    $region29: #{tpu_custom_call.1} parent=5 // pred_check
      _
    $region30: #{tpu_custom_call.1} parent=5 // pred_check_branch
      %141 = sbr.rel (%p138) target = $region32
    $region31: #{tpu_custom_call.1} parent=5 // pred_region
      %s142 = ssub.s32 %s9, 1
      %p143 = scmp.lt.s32.totalorder %s14, 1
      %s144 = scalar_select %p143, %s14, 1
      %s145 = smul.addr %s144, 32
      %s146 = smul.addr %s145, 8
      %s147 = scalar_lea.vmem %s0, %s146
      %p148 = pneg %p35
      %p149 = pneg %p32
      %p150 = pneg %p56
      %p151 = pneg %p53
      %p152 = pneg %p77
      %p153 = pneg %p74
      %p154 = pneg %p103
      %p155 = pneg %p100
      %p156 = scmp.lt.s32.totalorder %s14, 1
      %s157 = scalar_select %p156, %s14, 1
      %s158 = smul.addr %s157, 32
      %s159 = smul.addr %s158, 8
      %s160 = scalar_lea.vmem %s3, %s159
      %p161 = scmp.lt.s32.totalorder %s14, 1
      %s162 = scalar_select %p161, %s14, 1
      %s163 = smul.addr %s162, 32
      %s164 = smul.addr %s163, 8
      %s165 = scalar_lea.vmem %s0, %s164
      %p166 = scmp.lt.s32.totalorder %s14, 1
      %s167 = scalar_select %p166, %s14, 1
      %s168 = smul.addr %s167, 32
      %s169 = smul.addr %s168, 8
      %s170 = scalar_lea.vmem %s3, %s169
      %v172 = vld [vmem:[%s165] sm:$0xff]
      %v173 = vld [vmem:[%s165 + $0x8] sm:$0xff]
      %v174 = vld [vmem:[%s165 + $0x10] sm:$0xff]
      %v175 = vld [vmem:[%s165 + $0x18] sm:$0xff]
      %v176 = vld [vmem:[%s165 + $0x20] sm:$0xff]
      %v177 = vld [vmem:[%s165 + $0x28] sm:$0xff]
      %v178 = vld [vmem:[%s165 + $0x30] sm:$0xff]
      %v179 = vld [vmem:[%s165 + $0x38] sm:$0xff]
      %v180 = vld [vmem:[%s165 + $0x40] sm:$0xff]
      %v181 = vld [vmem:[%s165 + $0x48] sm:$0xff]
      %v182 = vld [vmem:[%s165 + $0x50] sm:$0xff]
      %v183 = vld [vmem:[%s165 + $0x58] sm:$0xff]
      %v184 = vld [vmem:[%s165 + $0x60] sm:$0xff]
      %v185 = vld [vmem:[%s165 + $0x68] sm:$0xff]
      %v186 = vld [vmem:[%s165 + $0x70] sm:$0xff]
      %v187 = vld [vmem:[%s165 + $0x78] sm:$0xff]
      %v188 = vld [vmem:[%s165 + $0x80] sm:$0xff]
      %v189 = vld [vmem:[%s165 + $0x88] sm:$0xff]
      %v190 = vld [vmem:[%s165 + $0x90] sm:$0xff]
      %v191 = vld [vmem:[%s165 + $0x98] sm:$0xff]
      %v192 = vld [vmem:[%s165 + $0xa0] sm:$0xff]
      %v193 = vld [vmem:[%s165 + $0xa8] sm:$0xff]
      %v194 = vld [vmem:[%s165 + $0xb0] sm:$0xff]
      %v195 = vld [vmem:[%s165 + $0xb8] sm:$0xff]
      %v196 = vld [vmem:[%s165 + $0xc0] sm:$0xff]
      %v197 = vld [vmem:[%s165 + $0xc8] sm:$0xff]
      %v198 = vld [vmem:[%s165 + $0xd0] sm:$0xff]
      %v199 = vld [vmem:[%s165 + $0xd8] sm:$0xff]
      %v200 = vld [vmem:[%s165 + $0xe0] sm:$0xff]
      %v201 = vld [vmem:[%s165 + $0xe8] sm:$0xff]
      %v202 = vld [vmem:[%s165 + $0xf0] sm:$0xff]
      %v203 = vld [vmem:[%s165 + $0xf8] sm:$0xff]
      %vm204 = vcmask 31744
      %205 = vst.msk [vmem:[#allocation2] sm:$0xff] %vm204, 0.0
      %206 = vst.msk [vmem:[#allocation2 + $0x8] sm:$0xff] %vm204, 0.0
      %vm207 = vcmask 25600
      %208 = vst.msk [vmem:[#allocation2 + $0x10] sm:$0x3] %vm207, 0.0
      %209 = vst.msk [vmem:[#allocation2 + $0x18] sm:$0xff] %vm204, 0.0
      %210 = vst.msk [vmem:[#allocation2 + $0x20] sm:$0xff] %vm204, 0.0
      %211 = vst.msk [vmem:[#allocation2 + $0x28] sm:$0x3] %vm207, 0.0
      %212 = vst.msk [vmem:[#allocation2 + $0x30] sm:$0xff] %vm204, 0.0
      %213 = vst.msk [vmem:[#allocation2 + $0x38] sm:$0xff] %vm204, 0.0
      %214 = vst.msk [vmem:[#allocation2 + $0x40] sm:$0x3] %vm207, 0.0
      %215 = vst.msk [vmem:[#allocation2 + $0x48] sm:$0xff] %vm204, 0.0
      %216 = vst.msk [vmem:[#allocation2 + $0x50] sm:$0xff] %vm204, 0.0
      %217 = vst.msk [vmem:[#allocation2 + $0x58] sm:$0x3] %vm207, 0.0
      %218 = vst.msk [vmem:[#allocation2 + $0x60] sm:$0xff] %vm204, 0.0
      %219 = vst.msk [vmem:[#allocation2 + $0x68] sm:$0xff] %vm204, 0.0
      %220 = vst.msk [vmem:[#allocation2 + $0x70] sm:$0x3] %vm207, 0.0
      %221 = vst.msk [vmem:[#allocation2 + $0x78] sm:$0xff] %vm204, 0.0
      %222 = vst.msk [vmem:[#allocation2 + $0x80] sm:$0xff] %vm204, 0.0
      %223 = vst.msk [vmem:[#allocation2 + $0x88] sm:$0x3] %vm207, 0.0
      %224 = vst.msk [vmem:[#allocation2 + $0x90] sm:$0xff] %vm204, 0.0
      %225 = vst.msk [vmem:[#allocation2 + $0x98] sm:$0xff] %vm204, 0.0
      %226 = vst.msk [vmem:[#allocation2 + $0xa0] sm:$0x3] %vm207, 0.0
      %227 = vst.msk [vmem:[#allocation2 + $0xa8] sm:$0xff] %vm204, 0.0
      %228 = vst.msk [vmem:[#allocation2 + $0xb0] sm:$0xff] %vm204, 0.0
      %229 = vst.msk [vmem:[#allocation2 + $0xb8] sm:$0x3] %vm207, 0.0
      %230 = vst.msk [vmem:[#allocation2 + $0xc0] sm:$0xff] %vm204, 0.0
      %231 = vst.msk [vmem:[#allocation2 + $0xc8] sm:$0xff] %vm204, 0.0
      %232 = vst.msk [vmem:[#allocation2 + $0xd0] sm:$0x3] %vm207, 0.0
      %233 = vst.msk [vmem:[#allocation2 + $0xd8] sm:$0xff] %vm204, 0.0
      %234 = vst.msk [vmem:[#allocation2 + $0xe0] sm:$0xff] %vm204, 0.0
      %235 = vst.msk [vmem:[#allocation2 + $0xe8] sm:$0x3] %vm207, 0.0
      %236 = vst.msk [vmem:[#allocation2 + $0xf0] sm:$0xff] %vm204, 0.0
      %237 = vst.msk [vmem:[#allocation2 + $0xf8] sm:$0xff] %vm204, 0.0
      %238 = vst.msk [vmem:[#allocation2 + $0x100] sm:$0x3] %vm207, 0.0
      %239 = vst.msk [vmem:[#allocation2 + $0x108] sm:$0xff] %vm204, 0.0
      %240 = vst.msk [vmem:[#allocation2 + $0x110] sm:$0xff] %vm204, 0.0
      %241 = vst.msk [vmem:[#allocation2 + $0x118] sm:$0x3] %vm207, 0.0
      %242 = vst.msk [vmem:[#allocation2 + $0x120] sm:$0xff] %vm204, 0.0
      %243 = vst.msk [vmem:[#allocation2 + $0x128] sm:$0xff] %vm204, 0.0
      %244 = vst.msk [vmem:[#allocation2 + $0x130] sm:$0x3] %vm207, 0.0
      %245 = vst.msk [vmem:[#allocation2 + $0x138] sm:$0xff] %vm204, 0.0
      %246 = vst.msk [vmem:[#allocation2 + $0x140] sm:$0xff] %vm204, 0.0
      %247 = vst.msk [vmem:[#allocation2 + $0x148] sm:$0x3] %vm207, 0.0
      %248 = vst.msk [vmem:[#allocation2 + $0x150] sm:$0xff] %vm204, 0.0
      %249 = vst.msk [vmem:[#allocation2 + $0x158] sm:$0xff] %vm204, 0.0
      %250 = vst.msk [vmem:[#allocation2 + $0x160] sm:$0x3] %vm207, 0.0
      %251 = vst.msk [vmem:[#allocation2 + $0x168] sm:$0xff] %vm204, 0.0
      %252 = vst.msk [vmem:[#allocation2 + $0x170] sm:$0xff] %vm204, 0.0
      %253 = vst.msk [vmem:[#allocation2 + $0x178] sm:$0x3] %vm207, 0.0
      %254 = vst.msk [vmem:[#allocation2 + $0x180] sm:$0xff] %vm204, 0.0
      %255 = vst.msk [vmem:[#allocation2 + $0x188] sm:$0xff] %vm204, 0.0
      %256 = vst.msk [vmem:[#allocation2 + $0x190] sm:$0x3] %vm207, 0.0
      %257 = vst.msk [vmem:[#allocation2 + $0x198] sm:$0xff] %vm204, 0.0
      %258 = vst.msk [vmem:[#allocation2 + $0x1a0] sm:$0xff] %vm204, 0.0
      %259 = vst.msk [vmem:[#allocation2 + $0x1a8] sm:$0x3] %vm207, 0.0
      %s260 = scalar_lea.vmem [#allocation2], 24
      %261 = vst.msk [vmem:[%s260 + $0x1] sm:$0xff] %vm204, %v172
      %262 = vst.msk [vmem:[%s260 + $0x9] sm:$0xff] %vm204, %v173
      %263 = vst.msk [vmem:[%s260 + $0x19] sm:$0xff] %vm204, %v174
      %264 = vst.msk [vmem:[%s260 + $0x21] sm:$0xff] %vm204, %v175
      %265 = vst.msk [vmem:[%s260 + $0x31] sm:$0xff] %vm204, %v176
      %266 = vst.msk [vmem:[%s260 + $0x39] sm:$0xff] %vm204, %v177
      %267 = vst.msk [vmem:[%s260 + $0x49] sm:$0xff] %vm204, %v178
      %268 = vst.msk [vmem:[%s260 + $0x51] sm:$0xff] %vm204, %v179
      %269 = vst.msk [vmem:[%s260 + $0x61] sm:$0xff] %vm204, %v180
      %270 = vst.msk [vmem:[%s260 + $0x69] sm:$0xff] %vm204, %v181
      %271 = vst.msk [vmem:[%s260 + $0x79] sm:$0xff] %vm204, %v182
      %272 = vst.msk [vmem:[%s260 + $0x81] sm:$0xff] %vm204, %v183
      %273 = vst.msk [vmem:[%s260 + $0x91] sm:$0xff] %vm204, %v184
      %274 = vst.msk [vmem:[%s260 + $0x99] sm:$0xff] %vm204, %v185
      %275 = vst.msk [vmem:[%s260 + $0xa9] sm:$0xff] %vm204, %v186
      %276 = vst.msk [vmem:[%s260 + $0xb1] sm:$0xff] %vm204, %v187
      %277 = vst.msk [vmem:[%s260 + $0xc1] sm:$0xff] %vm204, %v188
      %278 = vst.msk [vmem:[%s260 + $0xc9] sm:$0xff] %vm204, %v189
      %279 = vst.msk [vmem:[%s260 + $0xd9] sm:$0xff] %vm204, %v190
      %280 = vst.msk [vmem:[%s260 + $0xe1] sm:$0xff] %vm204, %v191
      %281 = vst.msk [vmem:[%s260 + $0xf1] sm:$0xff] %vm204, %v192
      %282 = vst.msk [vmem:[%s260 + $0xf9] sm:$0xff] %vm204, %v193
      %283 = vst.msk [vmem:[%s260 + $0x109] sm:$0xff] %vm204, %v194
      %284 = vst.msk [vmem:[%s260 + $0x111] sm:$0xff] %vm204, %v195
      %285 = vst.msk [vmem:[%s260 + $0x121] sm:$0xff] %vm204, %v196
      %286 = vst.msk [vmem:[%s260 + $0x129] sm:$0xff] %vm204, %v197
      %287 = vst.msk [vmem:[%s260 + $0x139] sm:$0xff] %vm204, %v198
      %288 = vst.msk [vmem:[%s260 + $0x141] sm:$0xff] %vm204, %v199
      %289 = vst.msk [vmem:[%s260 + $0x151] sm:$0xff] %vm204, %v200
      %290 = vst.msk [vmem:[%s260 + $0x159] sm:$0xff] %vm204, %v201
      %291 = vst.msk [vmem:[%s260 + $0x169] sm:$0xff] %vm204, %v202
      %292 = vst.msk [vmem:[%s260 + $0x171] sm:$0xff] %vm204, %v203
      %v293 = vld [vmem:[#allocation2] sm:$0xff]
      %v294 = vld [vmem:[#allocation2 + $0x8] sm:$0xff]
      %v295 = vld [vmem:[#allocation2 + $0x18] sm:$0xff]
      %v296 = vld [vmem:[#allocation2 + $0x20] sm:$0xff]
      %v297 = vld [vmem:[#allocation2 + $0x30] sm:$0xff]
      %v298 = vld [vmem:[#allocation2 + $0x38] sm:$0xff]
      %v299 = vld [vmem:[#allocation2 + $0x48] sm:$0xff]
      %v300 = vld [vmem:[#allocation2 + $0x50] sm:$0xff]
      %v301 = vld [vmem:[#allocation2 + $0x60] sm:$0xff]
      %v302 = vld [vmem:[#allocation2 + $0x68] sm:$0xff]
      %v303 = vld [vmem:[#allocation2 + $0x78] sm:$0xff]
      %v304 = vld [vmem:[#allocation2 + $0x80] sm:$0xff]
      %v305 = vld [vmem:[#allocation2 + $0x90] sm:$0xff]
      %v306 = vld [vmem:[#allocation2 + $0x98] sm:$0xff]
      %v307 = vld [vmem:[#allocation2 + $0xa8] sm:$0xff]
      %v308 = vld [vmem:[#allocation2 + $0xb0] sm:$0xff]
      %v309 = vld [vmem:[#allocation2 + $0xc0] sm:$0xff]
      %v310 = vld [vmem:[#allocation2 + $0xc8] sm:$0xff]
      %v311 = vld [vmem:[#allocation2 + $0xd8] sm:$0xff]
      %v312 = vld [vmem:[#allocation2 + $0xe0] sm:$0xff]
      %v313 = vld [vmem:[#allocation2 + $0xf0] sm:$0xff]
      %v314 = vld [vmem:[#allocation2 + $0xf8] sm:$0xff]
      %v315 = vld [vmem:[#allocation2 + $0x108] sm:$0xff]
      %v316 = vld [vmem:[#allocation2 + $0x110] sm:$0xff]
      %v317 = vld [vmem:[#allocation2 + $0x120] sm:$0xff]
      %v318 = vld [vmem:[#allocation2 + $0x128] sm:$0xff]
      %v319 = vld [vmem:[#allocation2 + $0x138] sm:$0xff]
      %v320 = vld [vmem:[#allocation2 + $0x140] sm:$0xff]
      %v321 = vld [vmem:[#allocation2 + $0x150] sm:$0xff]
      %v322 = vld [vmem:[#allocation2 + $0x158] sm:$0xff]
      %v323 = vld [vmem:[#allocation2 + $0x168] sm:$0xff]
      %v324 = vld [vmem:[#allocation2 + $0x170] sm:$0xff]
      %v325 = vpack.c.bf16 %v293, %v293
      %v326 = vpack.c.bf16 %v294, %v294
      %v327 = vpack.c.bf16 %v295, %v295
      %v328 = vpack.c.bf16 %v296, %v296
      %v329 = vpack.c.bf16 %v297, %v297
      %v330 = vpack.c.bf16 %v298, %v298
      %v331 = vpack.c.bf16 %v299, %v299
      %v332 = vpack.c.bf16 %v300, %v300
      %v333 = vpack.c.bf16 %v301, %v301
      %v334 = vpack.c.bf16 %v302, %v302
      %v335 = vpack.c.bf16 %v303, %v303
      %v336 = vpack.c.bf16 %v304, %v304
      %v337 = vpack.c.bf16 %v305, %v305
      %v338 = vpack.c.bf16 %v306, %v306
      %v339 = vpack.c.bf16 %v307, %v307
      %v340 = vpack.c.bf16 %v308, %v308
      %v341 = vpack.c.bf16 %v309, %v309
      %v342 = vpack.c.bf16 %v310, %v310
      %v343 = vpack.c.bf16 %v311, %v311
      %v344 = vpack.c.bf16 %v312, %v312
      %v345 = vpack.c.bf16 %v313, %v313
      %v346 = vpack.c.bf16 %v314, %v314
      %v347 = vpack.c.bf16 %v315, %v315
      %v348 = vpack.c.bf16 %v316, %v316
      %v349 = vpack.c.bf16 %v317, %v317
      %v350 = vpack.c.bf16 %v318, %v318
      %v351 = vpack.c.bf16 %v319, %v319
      %v352 = vpack.c.bf16 %v320, %v320
      %v353 = vpack.c.bf16 %v321, %v321
      %v354 = vpack.c.bf16 %v322, %v322
      %v355 = vpack.c.bf16 %v323, %v323
      %v356 = vpack.c.bf16 %v324, %v324
      %vm357 = vcmask 27648
      %358 = vst.msk [vmem:[#allocation3] sm:$0xf] %vm357, %v325
      %359 = vst.msk [vmem:[#allocation3 + $0x4] sm:$0xf] %vm357, %v326
      %360 = vst.msk [vmem:[#allocation3 + $0x8] sm:$0xf] %vm357, %v327
      %361 = vst.msk [vmem:[#allocation3 + $0xc] sm:$0xf] %vm357, %v328
      %362 = vst.msk [vmem:[#allocation3 + $0x10] sm:$0xf] %vm357, %v329
      %363 = vst.msk [vmem:[#allocation3 + $0x14] sm:$0xf] %vm357, %v330
      %364 = vst.msk [vmem:[#allocation3 + $0x18] sm:$0xf] %vm357, %v331
      %365 = vst.msk [vmem:[#allocation3 + $0x1c] sm:$0xf] %vm357, %v332
      %366 = vst.msk [vmem:[#allocation3 + $0x20] sm:$0xf] %vm357, %v333
      %367 = vst.msk [vmem:[#allocation3 + $0x24] sm:$0xf] %vm357, %v334
      %368 = vst.msk [vmem:[#allocation3 + $0x28] sm:$0xf] %vm357, %v335
      %369 = vst.msk [vmem:[#allocation3 + $0x2c] sm:$0xf] %vm357, %v336
      %370 = vst.msk [vmem:[#allocation3 + $0x30] sm:$0xf] %vm357, %v337
      %371 = vst.msk [vmem:[#allocation3 + $0x34] sm:$0xf] %vm357, %v338
      %372 = vst.msk [vmem:[#allocation3 + $0x38] sm:$0xf] %vm357, %v339
      %373 = vst.msk [vmem:[#allocation3 + $0x3c] sm:$0xf] %vm357, %v340
      %374 = vst.msk [vmem:[#allocation3 + $0x40] sm:$0xf] %vm357, %v341
      %375 = vst.msk [vmem:[#allocation3 + $0x44] sm:$0xf] %vm357, %v342
      %376 = vst.msk [vmem:[#allocation3 + $0x48] sm:$0xf] %vm357, %v343
      %377 = vst.msk [vmem:[#allocation3 + $0x4c] sm:$0xf] %vm357, %v344
      %378 = vst.msk [vmem:[#allocation3 + $0x50] sm:$0xf] %vm357, %v345
      %379 = vst.msk [vmem:[#allocation3 + $0x54] sm:$0xf] %vm357, %v346
      %380 = vst.msk [vmem:[#allocation3 + $0x58] sm:$0xf] %vm357, %v347
      %381 = vst.msk [vmem:[#allocation3 + $0x5c] sm:$0xf] %vm357, %v348
      %382 = vst.msk [vmem:[#allocation3 + $0x60] sm:$0xf] %vm357, %v349
      %383 = vst.msk [vmem:[#allocation3 + $0x64] sm:$0xf] %vm357, %v350
      %384 = vst.msk [vmem:[#allocation3 + $0x68] sm:$0xf] %vm357, %v351
      %385 = vst.msk [vmem:[#allocation3 + $0x6c] sm:$0xf] %vm357, %v352
      %386 = vst.msk [vmem:[#allocation3 + $0x70] sm:$0xf] %vm357, %v353
      %387 = vst.msk [vmem:[#allocation3 + $0x74] sm:$0xf] %vm357, %v354
      %388 = vst.msk [vmem:[#allocation3 + $0x78] sm:$0xf] %vm357, %v355
      %389 = vst.msk [vmem:[#allocation3 + $0x7c] sm:$0xf] %vm357, %v356
      %v390 = vld [vmem:[#allocation2 + $0x1] sm:$0xff]
      %v391 = vld [vmem:[#allocation2 + $0x9] sm:$0xff]
      %v392 = vld [vmem:[#allocation2 + $0x19] sm:$0xff]
      %v393 = vld [vmem:[#allocation2 + $0x21] sm:$0xff]
      %v394 = vld [vmem:[#allocation2 + $0x31] sm:$0xff]
      %v395 = vld [vmem:[#allocation2 + $0x39] sm:$0xff]
      %v396 = vld [vmem:[#allocation2 + $0x49] sm:$0xff]
      %v397 = vld [vmem:[#allocation2 + $0x51] sm:$0xff]
      %v398 = vld [vmem:[#allocation2 + $0x61] sm:$0xff]
      %v399 = vld [vmem:[#allocation2 + $0x69] sm:$0xff]
      %v400 = vld [vmem:[#allocation2 + $0x79] sm:$0xff]
      %v401 = vld [vmem:[#allocation2 + $0x81] sm:$0xff]
      %v402 = vld [vmem:[#allocation2 + $0x91] sm:$0xff]
      %v403 = vld [vmem:[#allocation2 + $0x99] sm:$0xff]
      %v404 = vld [vmem:[#allocation2 + $0xa9] sm:$0xff]
      %v405 = vld [vmem:[#allocation2 + $0xb1] sm:$0xff]
      %v406 = vld [vmem:[#allocation2 + $0xc1] sm:$0xff]
      %v407 = vld [vmem:[#allocation2 + $0xc9] sm:$0xff]
      %v408 = vld [vmem:[#allocation2 + $0xd9] sm:$0xff]
      %v409 = vld [vmem:[#allocation2 + $0xe1] sm:$0xff]
      %v410 = vld [vmem:[#allocation2 + $0xf1] sm:$0xff]
      %v411 = vld [vmem:[#allocation2 + $0xf9] sm:$0xff]
      %v412 = vld [vmem:[#allocation2 + $0x109] sm:$0xff]
      %v413 = vld [vmem:[#allocation2 + $0x111] sm:$0xff]
      %v414 = vld [vmem:[#allocation2 + $0x121] sm:$0xff]
      %v415 = vld [vmem:[#allocation2 + $0x129] sm:$0xff]
      %v416 = vld [vmem:[#allocation2 + $0x139] sm:$0xff]
      %v417 = vld [vmem:[#allocation2 + $0x141] sm:$0xff]
      %v418 = vld [vmem:[#allocation2 + $0x151] sm:$0xff]
      %v419 = vld [vmem:[#allocation2 + $0x159] sm:$0xff]
      %v420 = vld [vmem:[#allocation2 + $0x169] sm:$0xff]
      %v421 = vld [vmem:[#allocation2 + $0x171] sm:$0xff]
      %v422 = vpack.c.bf16 %v390, %v390
      %v423 = vpack.c.bf16 %v391, %v391
      %v424 = vpack.c.bf16 %v392, %v392
      %v425 = vpack.c.bf16 %v393, %v393
      %v426 = vpack.c.bf16 %v394, %v394
      %v427 = vpack.c.bf16 %v395, %v395
      %v428 = vpack.c.bf16 %v396, %v396
      %v429 = vpack.c.bf16 %v397, %v397
      %v430 = vpack.c.bf16 %v398, %v398
      %v431 = vpack.c.bf16 %v399, %v399
      %v432 = vpack.c.bf16 %v400, %v400
      %v433 = vpack.c.bf16 %v401, %v401
      %v434 = vpack.c.bf16 %v402, %v402
      %v435 = vpack.c.bf16 %v403, %v403
      %v436 = vpack.c.bf16 %v404, %v404
      %v437 = vpack.c.bf16 %v405, %v405
      %v438 = vpack.c.bf16 %v406, %v406
      %v439 = vpack.c.bf16 %v407, %v407
      %v440 = vpack.c.bf16 %v408, %v408
      %v441 = vpack.c.bf16 %v409, %v409
      %v442 = vpack.c.bf16 %v410, %v410
      %v443 = vpack.c.bf16 %v411, %v411
      %v444 = vpack.c.bf16 %v412, %v412
      %v445 = vpack.c.bf16 %v413, %v413
      %v446 = vpack.c.bf16 %v414, %v414
      %v447 = vpack.c.bf16 %v415, %v415
      %v448 = vpack.c.bf16 %v416, %v416
      %v449 = vpack.c.bf16 %v417, %v417
      %v450 = vpack.c.bf16 %v418, %v418
      %v451 = vpack.c.bf16 %v419, %v419
      %v452 = vpack.c.bf16 %v420, %v420
      %v453 = vpack.c.bf16 %v421, %v421
      %486 = vrot.lane.b32.xlu0 %v422, 4
      %v487 = vpop.permute.xlu0 %486
      %488 = vrot.lane.b32.xlu0 %v423, 4
      %v489 = vpop.permute.xlu0 %488
      %490 = vrot.lane.b32.xlu0 %v424, 4
      %v491 = vpop.permute.xlu0 %490
      %492 = vrot.lane.b32.xlu0 %v425, 4
      %v493 = vpop.permute.xlu0 %492
      %494 = vrot.lane.b32.xlu0 %v426, 4
      %v495 = vpop.permute.xlu0 %494
      %496 = vrot.lane.b32.xlu0 %v427, 4
      %v497 = vpop.permute.xlu0 %496
      %498 = vrot.lane.b32.xlu0 %v428, 4
      %v499 = vpop.permute.xlu0 %498
      %500 = vrot.lane.b32.xlu0 %v429, 4
      %v501 = vpop.permute.xlu0 %500
      %502 = vrot.lane.b32.xlu0 %v430, 4
      %v503 = vpop.permute.xlu0 %502
      %504 = vrot.lane.b32.xlu0 %v431, 4
      %v505 = vpop.permute.xlu0 %504
      %506 = vrot.lane.b32.xlu0 %v432, 4
      %v507 = vpop.permute.xlu0 %506
      %508 = vrot.lane.b32.xlu0 %v433, 4
      %v509 = vpop.permute.xlu0 %508
      %510 = vrot.lane.b32.xlu0 %v434, 4
      %v511 = vpop.permute.xlu0 %510
      %512 = vrot.lane.b32.xlu0 %v435, 4
      %v513 = vpop.permute.xlu0 %512
      %514 = vrot.lane.b32.xlu0 %v436, 4
      %v515 = vpop.permute.xlu0 %514
      %516 = vrot.lane.b32.xlu0 %v437, 4
      %v517 = vpop.permute.xlu0 %516
      %518 = vrot.lane.b32.xlu0 %v438, 4
      %v519 = vpop.permute.xlu0 %518
      %520 = vrot.lane.b32.xlu0 %v439, 4
      %v521 = vpop.permute.xlu0 %520
      %522 = vrot.lane.b32.xlu0 %v440, 4
      %v523 = vpop.permute.xlu0 %522
      %524 = vrot.lane.b32.xlu0 %v441, 4
      %v525 = vpop.permute.xlu0 %524
      %526 = vrot.lane.b32.xlu0 %v442, 4
      %v527 = vpop.permute.xlu0 %526
      %528 = vrot.lane.b32.xlu0 %v443, 4
      %v529 = vpop.permute.xlu0 %528
      %530 = vrot.lane.b32.xlu0 %v444, 4
      %v531 = vpop.permute.xlu0 %530
      %532 = vrot.lane.b32.xlu0 %v445, 4
      %v533 = vpop.permute.xlu0 %532
      %534 = vrot.lane.b32.xlu0 %v446, 4
      %v535 = vpop.permute.xlu0 %534
      %536 = vrot.lane.b32.xlu0 %v447, 4
      %v537 = vpop.permute.xlu0 %536
      %538 = vrot.lane.b32.xlu0 %v448, 4
      %v539 = vpop.permute.xlu0 %538
      %540 = vrot.lane.b32.xlu0 %v449, 4
      %v541 = vpop.permute.xlu0 %540
      %542 = vrot.lane.b32.xlu0 %v450, 4
      %v543 = vpop.permute.xlu0 %542
      %544 = vrot.lane.b32.xlu0 %v451, 4
      %v545 = vpop.permute.xlu0 %544
      %546 = vrot.lane.b32.xlu0 %v452, 4
      %v547 = vpop.permute.xlu0 %546
      %548 = vrot.lane.b32.xlu0 %v453, 4
      %v549 = vpop.permute.xlu0 %548
      %vm582 = vcmask 60448
      %583 = vst.msk [vmem:[#allocation3] sm:$0xf] %vm582, %v487
      %584 = vst.msk [vmem:[#allocation3 + $0x4] sm:$0xf] %vm582, %v489
      %585 = vst.msk [vmem:[#allocation3 + $0x8] sm:$0xf] %vm582, %v491
      %586 = vst.msk [vmem:[#allocation3 + $0xc] sm:$0xf] %vm582, %v493
      %587 = vst.msk [vmem:[#allocation3 + $0x10] sm:$0xf] %vm582, %v495
      %588 = vst.msk [vmem:[#allocation3 + $0x14] sm:$0xf] %vm582, %v497
      %589 = vst.msk [vmem:[#allocation3 + $0x18] sm:$0xf] %vm582, %v499
      %590 = vst.msk [vmem:[#allocation3 + $0x1c] sm:$0xf] %vm582, %v501
      %591 = vst.msk [vmem:[#allocation3 + $0x20] sm:$0xf] %vm582, %v503
      %592 = vst.msk [vmem:[#allocation3 + $0x24] sm:$0xf] %vm582, %v505
      %593 = vst.msk [vmem:[#allocation3 + $0x28] sm:$0xf] %vm582, %v507
      %594 = vst.msk [vmem:[#allocation3 + $0x2c] sm:$0xf] %vm582, %v509
      %595 = vst.msk [vmem:[#allocation3 + $0x30] sm:$0xf] %vm582, %v511
      %596 = vst.msk [vmem:[#allocation3 + $0x34] sm:$0xf] %vm582, %v513
      %597 = vst.msk [vmem:[#allocation3 + $0x38] sm:$0xf] %vm582, %v515
      %598 = vst.msk [vmem:[#allocation3 + $0x3c] sm:$0xf] %vm582, %v517
      %599 = vst.msk [vmem:[#allocation3 + $0x40] sm:$0xf] %vm582, %v519
      %600 = vst.msk [vmem:[#allocation3 + $0x44] sm:$0xf] %vm582, %v521
      %601 = vst.msk [vmem:[#allocation3 + $0x48] sm:$0xf] %vm582, %v523
      %602 = vst.msk [vmem:[#allocation3 + $0x4c] sm:$0xf] %vm582, %v525
      %603 = vst.msk [vmem:[#allocation3 + $0x50] sm:$0xf] %vm582, %v527
      %604 = vst.msk [vmem:[#allocation3 + $0x54] sm:$0xf] %vm582, %v529
      %605 = vst.msk [vmem:[#allocation3 + $0x58] sm:$0xf] %vm582, %v531
      %606 = vst.msk [vmem:[#allocation3 + $0x5c] sm:$0xf] %vm582, %v533
      %607 = vst.msk [vmem:[#allocation3 + $0x60] sm:$0xf] %vm582, %v535
      %608 = vst.msk [vmem:[#allocation3 + $0x64] sm:$0xf] %vm582, %v537
      %609 = vst.msk [vmem:[#allocation3 + $0x68] sm:$0xf] %vm582, %v539
      %610 = vst.msk [vmem:[#allocation3 + $0x6c] sm:$0xf] %vm582, %v541
      %611 = vst.msk [vmem:[#allocation3 + $0x70] sm:$0xf] %vm582, %v543
      %612 = vst.msk [vmem:[#allocation3 + $0x74] sm:$0xf] %vm582, %v545
      %613 = vst.msk [vmem:[#allocation3 + $0x78] sm:$0xf] %vm582, %v547
      %614 = vst.msk [vmem:[#allocation3 + $0x7c] sm:$0xf] %vm582, %v549
      %v615 = vld [vmem:[#allocation2 + $0x2] sm:$0xff]
      %v616 = vld [vmem:[#allocation2 + $0xa] sm:$0xff]
      %v617 = vld [vmem:[#allocation2 + $0x1a] sm:$0xff]
      %v618 = vld [vmem:[#allocation2 + $0x22] sm:$0xff]
      %v619 = vld [vmem:[#allocation2 + $0x32] sm:$0xff]
      %v620 = vld [vmem:[#allocation2 + $0x3a] sm:$0xff]
      %v621 = vld [vmem:[#allocation2 + $0x4a] sm:$0xff]
      %v622 = vld [vmem:[#allocation2 + $0x52] sm:$0xff]
      %v623 = vld [vmem:[#allocation2 + $0x62] sm:$0xff]
      %v624 = vld [vmem:[#allocation2 + $0x6a] sm:$0xff]
      %v625 = vld [vmem:[#allocation2 + $0x7a] sm:$0xff]
      %v626 = vld [vmem:[#allocation2 + $0x82] sm:$0xff]
      %v627 = vld [vmem:[#allocation2 + $0x92] sm:$0xff]
      %v628 = vld [vmem:[#allocation2 + $0x9a] sm:$0xff]
      %v629 = vld [vmem:[#allocation2 + $0xaa] sm:$0xff]
      %v630 = vld [vmem:[#allocation2 + $0xb2] sm:$0xff]
      %v631 = vld [vmem:[#allocation2 + $0xc2] sm:$0xff]
      %v632 = vld [vmem:[#allocation2 + $0xca] sm:$0xff]
      %v633 = vld [vmem:[#allocation2 + $0xda] sm:$0xff]
      %v634 = vld [vmem:[#allocation2 + $0xe2] sm:$0xff]
      %v635 = vld [vmem:[#allocation2 + $0xf2] sm:$0xff]
      %v636 = vld [vmem:[#allocation2 + $0xfa] sm:$0xff]
      %v637 = vld [vmem:[#allocation2 + $0x10a] sm:$0xff]
      %v638 = vld [vmem:[#allocation2 + $0x112] sm:$0xff]
      %v639 = vld [vmem:[#allocation2 + $0x122] sm:$0xff]
      %v640 = vld [vmem:[#allocation2 + $0x12a] sm:$0xff]
      %v641 = vld [vmem:[#allocation2 + $0x13a] sm:$0xff]
      %v642 = vld [vmem:[#allocation2 + $0x142] sm:$0xff]
      %v643 = vld [vmem:[#allocation2 + $0x152] sm:$0xff]
      %v644 = vld [vmem:[#allocation2 + $0x15a] sm:$0xff]
      %v645 = vld [vmem:[#allocation2 + $0x16a] sm:$0xff]
      %v646 = vld [vmem:[#allocation2 + $0x172] sm:$0xff]
      %v647 = vpack.c.bf16 %v615, %v615
      %v648 = vpack.c.bf16 %v616, %v616
      %v649 = vpack.c.bf16 %v617, %v617
      %v650 = vpack.c.bf16 %v618, %v618
      %v651 = vpack.c.bf16 %v619, %v619
      %v652 = vpack.c.bf16 %v620, %v620
      %v653 = vpack.c.bf16 %v621, %v621
      %v654 = vpack.c.bf16 %v622, %v622
      %v655 = vpack.c.bf16 %v623, %v623
      %v656 = vpack.c.bf16 %v624, %v624
      %v657 = vpack.c.bf16 %v625, %v625
      %v658 = vpack.c.bf16 %v626, %v626
      %v659 = vpack.c.bf16 %v627, %v627
      %v660 = vpack.c.bf16 %v628, %v628
      %v661 = vpack.c.bf16 %v629, %v629
      %v662 = vpack.c.bf16 %v630, %v630
      %v663 = vpack.c.bf16 %v631, %v631
      %v664 = vpack.c.bf16 %v632, %v632
      %v665 = vpack.c.bf16 %v633, %v633
      %v666 = vpack.c.bf16 %v634, %v634
      %v667 = vpack.c.bf16 %v635, %v635
      %v668 = vpack.c.bf16 %v636, %v636
      %v669 = vpack.c.bf16 %v637, %v637
      %v670 = vpack.c.bf16 %v638, %v638
      %v671 = vpack.c.bf16 %v639, %v639
      %v672 = vpack.c.bf16 %v640, %v640
      %v673 = vpack.c.bf16 %v641, %v641
      %v674 = vpack.c.bf16 %v642, %v642
      %v675 = vpack.c.bf16 %v643, %v643
      %v676 = vpack.c.bf16 %v644, %v644
      %v677 = vpack.c.bf16 %v645, %v645
      %v678 = vpack.c.bf16 %v646, %v646
      %711 = vrot.lane.b32.xlu0 %v647, 8
      %v712 = vpop.permute.xlu0 %711
      %713 = vrot.lane.b32.xlu0 %v648, 8
      %v714 = vpop.permute.xlu0 %713
      %715 = vrot.lane.b32.xlu0 %v649, 8
      %v716 = vpop.permute.xlu0 %715
      %717 = vrot.lane.b32.xlu0 %v650, 8
      %v718 = vpop.permute.xlu0 %717
      %719 = vrot.lane.b32.xlu0 %v651, 8
      %v720 = vpop.permute.xlu0 %719
      %721 = vrot.lane.b32.xlu0 %v652, 8
      %v722 = vpop.permute.xlu0 %721
      %723 = vrot.lane.b32.xlu0 %v653, 8
      %v724 = vpop.permute.xlu0 %723
      %725 = vrot.lane.b32.xlu0 %v654, 8
      %v726 = vpop.permute.xlu0 %725
      %727 = vrot.lane.b32.xlu0 %v655, 8
      %v728 = vpop.permute.xlu0 %727
      %729 = vrot.lane.b32.xlu0 %v656, 8
      %v730 = vpop.permute.xlu0 %729
      %731 = vrot.lane.b32.xlu0 %v657, 8
      %v732 = vpop.permute.xlu0 %731
      %733 = vrot.lane.b32.xlu0 %v658, 8
      %v734 = vpop.permute.xlu0 %733
      %735 = vrot.lane.b32.xlu0 %v659, 8
      %v736 = vpop.permute.xlu0 %735
      %737 = vrot.lane.b32.xlu0 %v660, 8
      %v738 = vpop.permute.xlu0 %737
      %739 = vrot.lane.b32.xlu0 %v661, 8
      %v740 = vpop.permute.xlu0 %739
      %741 = vrot.lane.b32.xlu0 %v662, 8
      %v742 = vpop.permute.xlu0 %741
      %743 = vrot.lane.b32.xlu0 %v663, 8
      %v744 = vpop.permute.xlu0 %743
      %745 = vrot.lane.b32.xlu0 %v664, 8
      %v746 = vpop.permute.xlu0 %745
      %747 = vrot.lane.b32.xlu0 %v665, 8
      %v748 = vpop.permute.xlu0 %747
      %749 = vrot.lane.b32.xlu0 %v666, 8
      %v750 = vpop.permute.xlu0 %749
      %751 = vrot.lane.b32.xlu0 %v667, 8
      %v752 = vpop.permute.xlu0 %751
      %753 = vrot.lane.b32.xlu0 %v668, 8
      %v754 = vpop.permute.xlu0 %753
      %755 = vrot.lane.b32.xlu0 %v669, 8
      %v756 = vpop.permute.xlu0 %755
      %757 = vrot.lane.b32.xlu0 %v670, 8
      %v758 = vpop.permute.xlu0 %757
      %759 = vrot.lane.b32.xlu0 %v671, 8
      %v760 = vpop.permute.xlu0 %759
      %761 = vrot.lane.b32.xlu0 %v672, 8
      %v762 = vpop.permute.xlu0 %761
      %763 = vrot.lane.b32.xlu0 %v673, 8
      %v764 = vpop.permute.xlu0 %763
      %765 = vrot.lane.b32.xlu0 %v674, 8
      %v766 = vpop.permute.xlu0 %765
      %767 = vrot.lane.b32.xlu0 %v675, 8
      %v768 = vpop.permute.xlu0 %767
      %769 = vrot.lane.b32.xlu0 %v676, 8
      %v770 = vpop.permute.xlu0 %769
      %771 = vrot.lane.b32.xlu0 %v677, 8
      %v772 = vpop.permute.xlu0 %771
      %773 = vrot.lane.b32.xlu0 %v678, 8
      %v774 = vpop.permute.xlu0 %773
      %vm807 = vcmask 93248
      %808 = vst.msk [vmem:[#allocation3] sm:$0xf] %vm807, %v712
      %809 = vst.msk [vmem:[#allocation3 + $0x4] sm:$0xf] %vm807, %v714
      %810 = vst.msk [vmem:[#allocation3 + $0x8] sm:$0xf] %vm807, %v716
      %811 = vst.msk [vmem:[#allocation3 + $0xc] sm:$0xf] %vm807, %v718
      %812 = vst.msk [vmem:[#allocation3 + $0x10] sm:$0xf] %vm807, %v720
      %813 = vst.msk [vmem:[#allocation3 + $0x14] sm:$0xf] %vm807, %v722
      %814 = vst.msk [vmem:[#allocation3 + $0x18] sm:$0xf] %vm807, %v724
      %815 = vst.msk [vmem:[#allocation3 + $0x1c] sm:$0xf] %vm807, %v726
      %816 = vst.msk [vmem:[#allocation3 + $0x20] sm:$0xf] %vm807, %v728
      %817 = vst.msk [vmem:[#allocation3 + $0x24] sm:$0xf] %vm807, %v730
      %818 = vst.msk [vmem:[#allocation3 + $0x28] sm:$0xf] %vm807, %v732
      %819 = vst.msk [vmem:[#allocation3 + $0x2c] sm:$0xf] %vm807, %v734
      %820 = vst.msk [vmem:[#allocation3 + $0x30] sm:$0xf] %vm807, %v736
      %821 = vst.msk [vmem:[#allocation3 + $0x34] sm:$0xf] %vm807, %v738
      %822 = vst.msk [vmem:[#allocation3 + $0x38] sm:$0xf] %vm807, %v740
      %823 = vst.msk [vmem:[#allocation3 + $0x3c] sm:$0xf] %vm807, %v742
      %824 = vst.msk [vmem:[#allocation3 + $0x40] sm:$0xf] %vm807, %v744
      %825 = vst.msk [vmem:[#allocation3 + $0x44] sm:$0xf] %vm807, %v746
      %826 = vst.msk [vmem:[#allocation3 + $0x48] sm:$0xf] %vm807, %v748
      %827 = vst.msk [vmem:[#allocation3 + $0x4c] sm:$0xf] %vm807, %v750
      %828 = vst.msk [vmem:[#allocation3 + $0x50] sm:$0xf] %vm807, %v752
      %829 = vst.msk [vmem:[#allocation3 + $0x54] sm:$0xf] %vm807, %v754
      %830 = vst.msk [vmem:[#allocation3 + $0x58] sm:$0xf] %vm807, %v756
      %831 = vst.msk [vmem:[#allocation3 + $0x5c] sm:$0xf] %vm807, %v758
      %832 = vst.msk [vmem:[#allocation3 + $0x60] sm:$0xf] %vm807, %v760
      %833 = vst.msk [vmem:[#allocation3 + $0x64] sm:$0xf] %vm807, %v762
      %834 = vst.msk [vmem:[#allocation3 + $0x68] sm:$0xf] %vm807, %v764
      %835 = vst.msk [vmem:[#allocation3 + $0x6c] sm:$0xf] %vm807, %v766
      %836 = vst.msk [vmem:[#allocation3 + $0x70] sm:$0xf] %vm807, %v768
      %837 = vst.msk [vmem:[#allocation3 + $0x74] sm:$0xf] %vm807, %v770
      %838 = vst.msk [vmem:[#allocation3 + $0x78] sm:$0xf] %vm807, %v772
      %839 = vst.msk [vmem:[#allocation3 + $0x7c] sm:$0xf] %vm807, %v774
      %v840 = vld [vmem:[%s260] sm:$0xff]
      %v841 = vld [vmem:[%s260 + $0x8] sm:$0xff]
      %v842 = vld [vmem:[%s260 + $0x18] sm:$0xff]
      %v843 = vld [vmem:[%s260 + $0x20] sm:$0xff]
      %v844 = vld [vmem:[%s260 + $0x30] sm:$0xff]
      %v845 = vld [vmem:[%s260 + $0x38] sm:$0xff]
      %v846 = vld [vmem:[%s260 + $0x48] sm:$0xff]
      %v847 = vld [vmem:[%s260 + $0x50] sm:$0xff]
      %v848 = vld [vmem:[%s260 + $0x60] sm:$0xff]
      %v849 = vld [vmem:[%s260 + $0x68] sm:$0xff]
      %v850 = vld [vmem:[%s260 + $0x78] sm:$0xff]
      %v851 = vld [vmem:[%s260 + $0x80] sm:$0xff]
      %v852 = vld [vmem:[%s260 + $0x90] sm:$0xff]
      %v853 = vld [vmem:[%s260 + $0x98] sm:$0xff]
      %v854 = vld [vmem:[%s260 + $0xa8] sm:$0xff]
      %v855 = vld [vmem:[%s260 + $0xb0] sm:$0xff]
      %v856 = vld [vmem:[%s260 + $0xc0] sm:$0xff]
      %v857 = vld [vmem:[%s260 + $0xc8] sm:$0xff]
      %v858 = vld [vmem:[%s260 + $0xd8] sm:$0xff]
      %v859 = vld [vmem:[%s260 + $0xe0] sm:$0xff]
      %v860 = vld [vmem:[%s260 + $0xf0] sm:$0xff]
      %v861 = vld [vmem:[%s260 + $0xf8] sm:$0xff]
      %v862 = vld [vmem:[%s260 + $0x108] sm:$0xff]
      %v863 = vld [vmem:[%s260 + $0x110] sm:$0xff]
      %v864 = vld [vmem:[%s260 + $0x120] sm:$0xff]
      %v865 = vld [vmem:[%s260 + $0x128] sm:$0xff]
      %v866 = vld [vmem:[%s260 + $0x138] sm:$0xff]
      %v867 = vld [vmem:[%s260 + $0x140] sm:$0xff]
      %v868 = vld [vmem:[%s260 + $0x150] sm:$0xff]
      %v869 = vld [vmem:[%s260 + $0x158] sm:$0xff]
      %v870 = vld [vmem:[%s260 + $0x168] sm:$0xff]
      %v871 = vld [vmem:[%s260 + $0x170] sm:$0xff]
      %v872 = vpack.c.bf16 %v840, %v840
      %v873 = vpack.c.bf16 %v841, %v841
      %v874 = vpack.c.bf16 %v842, %v842
      %v875 = vpack.c.bf16 %v843, %v843
      %v876 = vpack.c.bf16 %v844, %v844
      %v877 = vpack.c.bf16 %v845, %v845
      %v878 = vpack.c.bf16 %v846, %v846
      %v879 = vpack.c.bf16 %v847, %v847
      %v880 = vpack.c.bf16 %v848, %v848
      %v881 = vpack.c.bf16 %v849, %v849
      %v882 = vpack.c.bf16 %v850, %v850
      %v883 = vpack.c.bf16 %v851, %v851
      %v884 = vpack.c.bf16 %v852, %v852
      %v885 = vpack.c.bf16 %v853, %v853
      %v886 = vpack.c.bf16 %v854, %v854
      %v887 = vpack.c.bf16 %v855, %v855
      %v888 = vpack.c.bf16 %v856, %v856
      %v889 = vpack.c.bf16 %v857, %v857
      %v890 = vpack.c.bf16 %v858, %v858
      %v891 = vpack.c.bf16 %v859, %v859
      %v892 = vpack.c.bf16 %v860, %v860
      %v893 = vpack.c.bf16 %v861, %v861
      %v894 = vpack.c.bf16 %v862, %v862
      %v895 = vpack.c.bf16 %v863, %v863
      %v896 = vpack.c.bf16 %v864, %v864
      %v897 = vpack.c.bf16 %v865, %v865
      %v898 = vpack.c.bf16 %v866, %v866
      %v899 = vpack.c.bf16 %v867, %v867
      %v900 = vpack.c.bf16 %v868, %v868
      %v901 = vpack.c.bf16 %v869, %v869
      %v902 = vpack.c.bf16 %v870, %v870
      %v903 = vpack.c.bf16 %v871, %v871
      %936 = vrot.lane.b32.xlu0 %v872, 12
      %v937 = vpop.permute.xlu0 %936
      %938 = vrot.lane.b32.xlu0 %v873, 12
      %v939 = vpop.permute.xlu0 %938
      %940 = vrot.lane.b32.xlu0 %v874, 12
      %v941 = vpop.permute.xlu0 %940
      %942 = vrot.lane.b32.xlu0 %v875, 12
      %v943 = vpop.permute.xlu0 %942
      %944 = vrot.lane.b32.xlu0 %v876, 12
      %v945 = vpop.permute.xlu0 %944
      %946 = vrot.lane.b32.xlu0 %v877, 12
      %v947 = vpop.permute.xlu0 %946
      %948 = vrot.lane.b32.xlu0 %v878, 12
      %v949 = vpop.permute.xlu0 %948
      %950 = vrot.lane.b32.xlu0 %v879, 12
      %v951 = vpop.permute.xlu0 %950
      %952 = vrot.lane.b32.xlu0 %v880, 12
      %v953 = vpop.permute.xlu0 %952
      %954 = vrot.lane.b32.xlu0 %v881, 12
      %v955 = vpop.permute.xlu0 %954
      %956 = vrot.lane.b32.xlu0 %v882, 12
      %v957 = vpop.permute.xlu0 %956
      %958 = vrot.lane.b32.xlu0 %v883, 12
      %v959 = vpop.permute.xlu0 %958
      %960 = vrot.lane.b32.xlu0 %v884, 12
      %v961 = vpop.permute.xlu0 %960
      %962 = vrot.lane.b32.xlu0 %v885, 12
      %v963 = vpop.permute.xlu0 %962
      %964 = vrot.lane.b32.xlu0 %v886, 12
      %v965 = vpop.permute.xlu0 %964
      %966 = vrot.lane.b32.xlu0 %v887, 12
      %v967 = vpop.permute.xlu0 %966
      %968 = vrot.lane.b32.xlu0 %v888, 12
      %v969 = vpop.permute.xlu0 %968
      %970 = vrot.lane.b32.xlu0 %v889, 12
      %v971 = vpop.permute.xlu0 %970
      %972 = vrot.lane.b32.xlu0 %v890, 12
      %v973 = vpop.permute.xlu0 %972
      %974 = vrot.lane.b32.xlu0 %v891, 12
      %v975 = vpop.permute.xlu0 %974
      %976 = vrot.lane.b32.xlu0 %v892, 12
      %v977 = vpop.permute.xlu0 %976
      %978 = vrot.lane.b32.xlu0 %v893, 12
      %v979 = vpop.permute.xlu0 %978
      %980 = vrot.lane.b32.xlu0 %v894, 12
      %v981 = vpop.permute.xlu0 %980
      %982 = vrot.lane.b32.xlu0 %v895, 12
      %v983 = vpop.permute.xlu0 %982
      %984 = vrot.lane.b32.xlu0 %v896, 12
      %v985 = vpop.permute.xlu0 %984
      %986 = vrot.lane.b32.xlu0 %v897, 12
      %v987 = vpop.permute.xlu0 %986
      %988 = vrot.lane.b32.xlu0 %v898, 12
      %v989 = vpop.permute.xlu0 %988
      %990 = vrot.lane.b32.xlu0 %v899, 12
      %v991 = vpop.permute.xlu0 %990
      %992 = vrot.lane.b32.xlu0 %v900, 12
      %v993 = vpop.permute.xlu0 %992
      %994 = vrot.lane.b32.xlu0 %v901, 12
      %v995 = vpop.permute.xlu0 %994
      %996 = vrot.lane.b32.xlu0 %v902, 12
      %v997 = vpop.permute.xlu0 %996
      %998 = vrot.lane.b32.xlu0 %v903, 12
      %v999 = vpop.permute.xlu0 %998
      %vm1032 = vcmask 126048
      %1033 = vst.msk [vmem:[#allocation3] sm:$0xf] %vm1032, %v937
      %1034 = vst.msk [vmem:[#allocation3 + $0x4] sm:$0xf] %vm1032, %v939
      %1035 = vst.msk [vmem:[#allocation3 + $0x8] sm:$0xf] %vm1032, %v941
      %1036 = vst.msk [vmem:[#allocation3 + $0xc] sm:$0xf] %vm1032, %v943
      %1037 = vst.msk [vmem:[#allocation3 + $0x10] sm:$0xf] %vm1032, %v945
      %1038 = vst.msk [vmem:[#allocation3 + $0x14] sm:$0xf] %vm1032, %v947
      %1039 = vst.msk [vmem:[#allocation3 + $0x18] sm:$0xf] %vm1032, %v949
      %1040 = vst.msk [vmem:[#allocation3 + $0x1c] sm:$0xf] %vm1032, %v951
      %1041 = vst.msk [vmem:[#allocation3 + $0x20] sm:$0xf] %vm1032, %v953
      %1042 = vst.msk [vmem:[#allocation3 + $0x24] sm:$0xf] %vm1032, %v955
      %1043 = vst.msk [vmem:[#allocation3 + $0x28] sm:$0xf] %vm1032, %v957
      %1044 = vst.msk [vmem:[#allocation3 + $0x2c] sm:$0xf] %vm1032, %v959
      %1045 = vst.msk [vmem:[#allocation3 + $0x30] sm:$0xf] %vm1032, %v961
      %1046 = vst.msk [vmem:[#allocation3 + $0x34] sm:$0xf] %vm1032, %v963
      %1047 = vst.msk [vmem:[#allocation3 + $0x38] sm:$0xf] %vm1032, %v965
      %1048 = vst.msk [vmem:[#allocation3 + $0x3c] sm:$0xf] %vm1032, %v967
      %1049 = vst.msk [vmem:[#allocation3 + $0x40] sm:$0xf] %vm1032, %v969
      %1050 = vst.msk [vmem:[#allocation3 + $0x44] sm:$0xf] %vm1032, %v971
      %1051 = vst.msk [vmem:[#allocation3 + $0x48] sm:$0xf] %vm1032, %v973
      %1052 = vst.msk [vmem:[#allocation3 + $0x4c] sm:$0xf] %vm1032, %v975
      %1053 = vst.msk [vmem:[#allocation3 + $0x50] sm:$0xf] %vm1032, %v977
      %1054 = vst.msk [vmem:[#allocation3 + $0x54] sm:$0xf] %vm1032, %v979
      %1055 = vst.msk [vmem:[#allocation3 + $0x58] sm:$0xf] %vm1032, %v981
      %1056 = vst.msk [vmem:[#allocation3 + $0x5c] sm:$0xf] %vm1032, %v983
      %1057 = vst.msk [vmem:[#allocation3 + $0x60] sm:$0xf] %vm1032, %v985
      %1058 = vst.msk [vmem:[#allocation3 + $0x64] sm:$0xf] %vm1032, %v987
      %1059 = vst.msk [vmem:[#allocation3 + $0x68] sm:$0xf] %vm1032, %v989
      %1060 = vst.msk [vmem:[#allocation3 + $0x6c] sm:$0xf] %vm1032, %v991
      %1061 = vst.msk [vmem:[#allocation3 + $0x70] sm:$0xf] %vm1032, %v993
      %1062 = vst.msk [vmem:[#allocation3 + $0x74] sm:$0xf] %vm1032, %v995
      %1063 = vst.msk [vmem:[#allocation3 + $0x78] sm:$0xf] %vm1032, %v997
      %1064 = vst.msk [vmem:[#allocation3 + $0x7c] sm:$0xf] %vm1032, %v999
      %v1065 = vld [vmem:[%s260 + $0x1] sm:$0xff]
      %v1066 = vld [vmem:[%s260 + $0x9] sm:$0xff]
      %v1067 = vld [vmem:[%s260 + $0x19] sm:$0xff]
      %v1068 = vld [vmem:[%s260 + $0x21] sm:$0xff]
      %v1069 = vld [vmem:[%s260 + $0x31] sm:$0xff]
      %v1070 = vld [vmem:[%s260 + $0x39] sm:$0xff]
      %v1071 = vld [vmem:[%s260 + $0x49] sm:$0xff]
      %v1072 = vld [vmem:[%s260 + $0x51] sm:$0xff]
      %v1073 = vld [vmem:[%s260 + $0x61] sm:$0xff]
      %v1074 = vld [vmem:[%s260 + $0x69] sm:$0xff]
      %v1075 = vld [vmem:[%s260 + $0x79] sm:$0xff]
      %v1076 = vld [vmem:[%s260 + $0x81] sm:$0xff]
      %v1077 = vld [vmem:[%s260 + $0x91] sm:$0xff]
      %v1078 = vld [vmem:[%s260 + $0x99] sm:$0xff]
      %v1079 = vld [vmem:[%s260 + $0xa9] sm:$0xff]
      %v1080 = vld [vmem:[%s260 + $0xb1] sm:$0xff]
      %v1081 = vld [vmem:[%s260 + $0xc1] sm:$0xff]
      %v1082 = vld [vmem:[%s260 + $0xc9] sm:$0xff]
      %v1083 = vld [vmem:[%s260 + $0xd9] sm:$0xff]
      %v1084 = vld [vmem:[%s260 + $0xe1] sm:$0xff]
      %v1085 = vld [vmem:[%s260 + $0xf1] sm:$0xff]
      %v1086 = vld [vmem:[%s260 + $0xf9] sm:$0xff]
      %v1087 = vld [vmem:[%s260 + $0x109] sm:$0xff]
      %v1088 = vld [vmem:[%s260 + $0x111] sm:$0xff]
      %v1089 = vld [vmem:[%s260 + $0x121] sm:$0xff]
      %v1090 = vld [vmem:[%s260 + $0x129] sm:$0xff]
      %v1091 = vld [vmem:[%s260 + $0x139] sm:$0xff]
      %v1092 = vld [vmem:[%s260 + $0x141] sm:$0xff]
      %v1093 = vld [vmem:[%s260 + $0x151] sm:$0xff]
      %v1094 = vld [vmem:[%s260 + $0x159] sm:$0xff]
      %v1095 = vld [vmem:[%s260 + $0x169] sm:$0xff]
      %v1096 = vld [vmem:[%s260 + $0x171] sm:$0xff]
      %v1097 = vpack.c.bf16 %v1065, %v1065
      %v1098 = vpack.c.bf16 %v1066, %v1066
      %v1099 = vpack.c.bf16 %v1067, %v1067
      %v1100 = vpack.c.bf16 %v1068, %v1068
      %v1101 = vpack.c.bf16 %v1069, %v1069
      %v1102 = vpack.c.bf16 %v1070, %v1070
      %v1103 = vpack.c.bf16 %v1071, %v1071
      %v1104 = vpack.c.bf16 %v1072, %v1072
      %v1105 = vpack.c.bf16 %v1073, %v1073
      %v1106 = vpack.c.bf16 %v1074, %v1074
      %v1107 = vpack.c.bf16 %v1075, %v1075
      %v1108 = vpack.c.bf16 %v1076, %v1076
      %v1109 = vpack.c.bf16 %v1077, %v1077
      %v1110 = vpack.c.bf16 %v1078, %v1078
      %v1111 = vpack.c.bf16 %v1079, %v1079
      %v1112 = vpack.c.bf16 %v1080, %v1080
      %v1113 = vpack.c.bf16 %v1081, %v1081
      %v1114 = vpack.c.bf16 %v1082, %v1082
      %v1115 = vpack.c.bf16 %v1083, %v1083
      %v1116 = vpack.c.bf16 %v1084, %v1084
      %v1117 = vpack.c.bf16 %v1085, %v1085
      %v1118 = vpack.c.bf16 %v1086, %v1086
      %v1119 = vpack.c.bf16 %v1087, %v1087
      %v1120 = vpack.c.bf16 %v1088, %v1088
      %v1121 = vpack.c.bf16 %v1089, %v1089
      %v1122 = vpack.c.bf16 %v1090, %v1090
      %v1123 = vpack.c.bf16 %v1091, %v1091
      %v1124 = vpack.c.bf16 %v1092, %v1092
      %v1125 = vpack.c.bf16 %v1093, %v1093
      %v1126 = vpack.c.bf16 %v1094, %v1094
      %v1127 = vpack.c.bf16 %v1095, %v1095
      %v1128 = vpack.c.bf16 %v1096, %v1096
      %1161 = vrot.lane.b32.xlu0 %v1097, 16
      %v1162 = vpop.permute.xlu0 %1161
      %1163 = vrot.lane.b32.xlu0 %v1098, 16
      %v1164 = vpop.permute.xlu0 %1163
      %1165 = vrot.lane.b32.xlu0 %v1099, 16
      %v1166 = vpop.permute.xlu0 %1165
      %1167 = vrot.lane.b32.xlu0 %v1100, 16
      %v1168 = vpop.permute.xlu0 %1167
      %1169 = vrot.lane.b32.xlu0 %v1101, 16
      %v1170 = vpop.permute.xlu0 %1169
      %1171 = vrot.lane.b32.xlu0 %v1102, 16
      %v1172 = vpop.permute.xlu0 %1171
      %1173 = vrot.lane.b32.xlu0 %v1103, 16
      %v1174 = vpop.permute.xlu0 %1173
      %1175 = vrot.lane.b32.xlu0 %v1104, 16
      %v1176 = vpop.permute.xlu0 %1175
      %1177 = vrot.lane.b32.xlu0 %v1105, 16
      %v1178 = vpop.permute.xlu0 %1177
      %1179 = vrot.lane.b32.xlu0 %v1106, 16
      %v1180 = vpop.permute.xlu0 %1179
      %1181 = vrot.lane.b32.xlu0 %v1107, 16
      %v1182 = vpop.permute.xlu0 %1181
      %1183 = vrot.lane.b32.xlu0 %v1108, 16
      %v1184 = vpop.permute.xlu0 %1183
      %1185 = vrot.lane.b32.xlu0 %v1109, 16
      %v1186 = vpop.permute.xlu0 %1185
      %1187 = vrot.lane.b32.xlu0 %v1110, 16
      %v1188 = vpop.permute.xlu0 %1187
      %1189 = vrot.lane.b32.xlu0 %v1111, 16
      %v1190 = vpop.permute.xlu0 %1189
      %1191 = vrot.lane.b32.xlu0 %v1112, 16
      %v1192 = vpop.permute.xlu0 %1191
      %1193 = vrot.lane.b32.xlu0 %v1113, 16
      %v1194 = vpop.permute.xlu0 %1193
      %1195 = vrot.lane.b32.xlu0 %v1114, 16
      %v1196 = vpop.permute.xlu0 %1195
      %1197 = vrot.lane.b32.xlu0 %v1115, 16
      %v1198 = vpop.permute.xlu0 %1197
      %1199 = vrot.lane.b32.xlu0 %v1116, 16
      %v1200 = vpop.permute.xlu0 %1199
      %1201 = vrot.lane.b32.xlu0 %v1117, 16
      %v1202 = vpop.permute.xlu0 %1201
      %1203 = vrot.lane.b32.xlu0 %v1118, 16
      %v1204 = vpop.permute.xlu0 %1203
      %1205 = vrot.lane.b32.xlu0 %v1119, 16
      %v1206 = vpop.permute.xlu0 %1205
      %1207 = vrot.lane.b32.xlu0 %v1120, 16
      %v1208 = vpop.permute.xlu0 %1207
      %1209 = vrot.lane.b32.xlu0 %v1121, 16
      %v1210 = vpop.permute.xlu0 %1209
      %1211 = vrot.lane.b32.xlu0 %v1122, 16
      %v1212 = vpop.permute.xlu0 %1211
      %1213 = vrot.lane.b32.xlu0 %v1123, 16
      %v1214 = vpop.permute.xlu0 %1213
      %1215 = vrot.lane.b32.xlu0 %v1124, 16
      %v1216 = vpop.permute.xlu0 %1215
      %1217 = vrot.lane.b32.xlu0 %v1125, 16
      %v1218 = vpop.permute.xlu0 %1217
      %1219 = vrot.lane.b32.xlu0 %v1126, 16
      %v1220 = vpop.permute.xlu0 %1219
      %1221 = vrot.lane.b32.xlu0 %v1127, 16
      %v1222 = vpop.permute.xlu0 %1221
      %1223 = vrot.lane.b32.xlu0 %v1128, 16
      %v1224 = vpop.permute.xlu0 %1223
      %vm1257 = vcmask 158848
      %1258 = vst.msk [vmem:[#allocation3] sm:$0xf] %vm1257, %v1162
      %1259 = vst.msk [vmem:[#allocation3 + $0x4] sm:$0xf] %vm1257, %v1164
      %1260 = vst.msk [vmem:[#allocation3 + $0x8] sm:$0xf] %vm1257, %v1166
      %1261 = vst.msk [vmem:[#allocation3 + $0xc] sm:$0xf] %vm1257, %v1168
      %1262 = vst.msk [vmem:[#allocation3 + $0x10] sm:$0xf] %vm1257, %v1170
      %1263 = vst.msk [vmem:[#allocation3 + $0x14] sm:$0xf] %vm1257, %v1172
      %1264 = vst.msk [vmem:[#allocation3 + $0x18] sm:$0xf] %vm1257, %v1174
      %1265 = vst.msk [vmem:[#allocation3 + $0x1c] sm:$0xf] %vm1257, %v1176
      %1266 = vst.msk [vmem:[#allocation3 + $0x20] sm:$0xf] %vm1257, %v1178
      %1267 = vst.msk [vmem:[#allocation3 + $0x24] sm:$0xf] %vm1257, %v1180
      %1268 = vst.msk [vmem:[#allocation3 + $0x28] sm:$0xf] %vm1257, %v1182
      %1269 = vst.msk [vmem:[#allocation3 + $0x2c] sm:$0xf] %vm1257, %v1184
      %1270 = vst.msk [vmem:[#allocation3 + $0x30] sm:$0xf] %vm1257, %v1186
      %1271 = vst.msk [vmem:[#allocation3 + $0x34] sm:$0xf] %vm1257, %v1188
      %1272 = vst.msk [vmem:[#allocation3 + $0x38] sm:$0xf] %vm1257, %v1190
      %1273 = vst.msk [vmem:[#allocation3 + $0x3c] sm:$0xf] %vm1257, %v1192
      %1274 = vst.msk [vmem:[#allocation3 + $0x40] sm:$0xf] %vm1257, %v1194
      %1275 = vst.msk [vmem:[#allocation3 + $0x44] sm:$0xf] %vm1257, %v1196
      %1276 = vst.msk [vmem:[#allocation3 + $0x48] sm:$0xf] %vm1257, %v1198
      %1277 = vst.msk [vmem:[#allocation3 + $0x4c] sm:$0xf] %vm1257, %v1200
      %1278 = vst.msk [vmem:[#allocation3 + $0x50] sm:$0xf] %vm1257, %v1202
      %1279 = vst.msk [vmem:[#allocation3 + $0x54] sm:$0xf] %vm1257, %v1204
      %1280 = vst.msk [vmem:[#allocation3 + $0x58] sm:$0xf] %vm1257, %v1206
      %1281 = vst.msk [vmem:[#allocation3 + $0x5c] sm:$0xf] %vm1257, %v1208
      %1282 = vst.msk [vmem:[#allocation3 + $0x60] sm:$0xf] %vm1257, %v1210
      %1283 = vst.msk [vmem:[#allocation3 + $0x64] sm:$0xf] %vm1257, %v1212
      %1284 = vst.msk [vmem:[#allocation3 + $0x68] sm:$0xf] %vm1257, %v1214
      %1285 = vst.msk [vmem:[#allocation3 + $0x6c] sm:$0xf] %vm1257, %v1216
      %1286 = vst.msk [vmem:[#allocation3 + $0x70] sm:$0xf] %vm1257, %v1218
      %1287 = vst.msk [vmem:[#allocation3 + $0x74] sm:$0xf] %vm1257, %v1220
      %1288 = vst.msk [vmem:[#allocation3 + $0x78] sm:$0xf] %vm1257, %v1222
      %1289 = vst.msk [vmem:[#allocation3 + $0x7c] sm:$0xf] %vm1257, %v1224
      %v1290 = vld [vmem:[%s260 + $0x2] sm:$0xff]
      %v1291 = vld [vmem:[%s260 + $0xa] sm:$0xff]
      %v1292 = vld [vmem:[%s260 + $0x1a] sm:$0xff]
      %v1293 = vld [vmem:[%s260 + $0x22] sm:$0xff]
      %v1294 = vld [vmem:[%s260 + $0x32] sm:$0xff]
      %v1295 = vld [vmem:[%s260 + $0x3a] sm:$0xff]
      %v1296 = vld [vmem:[%s260 + $0x4a] sm:$0xff]
      %v1297 = vld [vmem:[%s260 + $0x52] sm:$0xff]
      %v1298 = vld [vmem:[%s260 + $0x62] sm:$0xff]
      %v1299 = vld [vmem:[%s260 + $0x6a] sm:$0xff]
      %v1300 = vld [vmem:[%s260 + $0x7a] sm:$0xff]
      %v1301 = vld [vmem:[%s260 + $0x82] sm:$0xff]
      %v1302 = vld [vmem:[%s260 + $0x92] sm:$0xff]
      %v1303 = vld [vmem:[%s260 + $0x9a] sm:$0xff]
      %v1304 = vld [vmem:[%s260 + $0xaa] sm:$0xff]
      %v1305 = vld [vmem:[%s260 + $0xb2] sm:$0xff]
      %v1306 = vld [vmem:[%s260 + $0xc2] sm:$0xff]
      %v1307 = vld [vmem:[%s260 + $0xca] sm:$0xff]
      %v1308 = vld [vmem:[%s260 + $0xda] sm:$0xff]
      %v1309 = vld [vmem:[%s260 + $0xe2] sm:$0xff]
      %v1310 = vld [vmem:[%s260 + $0xf2] sm:$0xff]
      %v1311 = vld [vmem:[%s260 + $0xfa] sm:$0xff]
      %v1312 = vld [vmem:[%s260 + $0x10a] sm:$0xff]
      %v1313 = vld [vmem:[%s260 + $0x112] sm:$0xff]
      %v1314 = vld [vmem:[%s260 + $0x122] sm:$0xff]
      %v1315 = vld [vmem:[%s260 + $0x12a] sm:$0xff]
      %v1316 = vld [vmem:[%s260 + $0x13a] sm:$0xff]
      %v1317 = vld [vmem:[%s260 + $0x142] sm:$0xff]
      %v1318 = vld [vmem:[%s260 + $0x152] sm:$0xff]
      %v1319 = vld [vmem:[%s260 + $0x15a] sm:$0xff]
      %v1320 = vld [vmem:[%s260 + $0x16a] sm:$0xff]
      %v1321 = vld [vmem:[%s260 + $0x172] sm:$0xff]
      %v1322 = vpack.c.bf16 %v1290, %v1290
      %v1323 = vpack.c.bf16 %v1291, %v1291
      %v1324 = vpack.c.bf16 %v1292, %v1292
      %v1325 = vpack.c.bf16 %v1293, %v1293
      %v1326 = vpack.c.bf16 %v1294, %v1294
      %v1327 = vpack.c.bf16 %v1295, %v1295
      %v1328 = vpack.c.bf16 %v1296, %v1296
      %v1329 = vpack.c.bf16 %v1297, %v1297
      %v1330 = vpack.c.bf16 %v1298, %v1298
      %v1331 = vpack.c.bf16 %v1299, %v1299
      %v1332 = vpack.c.bf16 %v1300, %v1300
      %v1333 = vpack.c.bf16 %v1301, %v1301
      %v1334 = vpack.c.bf16 %v1302, %v1302
      %v1335 = vpack.c.bf16 %v1303, %v1303
      %v1336 = vpack.c.bf16 %v1304, %v1304
      %v1337 = vpack.c.bf16 %v1305, %v1305
      %v1338 = vpack.c.bf16 %v1306, %v1306
      %v1339 = vpack.c.bf16 %v1307, %v1307
      %v1340 = vpack.c.bf16 %v1308, %v1308
      %v1341 = vpack.c.bf16 %v1309, %v1309
      %v1342 = vpack.c.bf16 %v1310, %v1310
      %v1343 = vpack.c.bf16 %v1311, %v1311
      %v1344 = vpack.c.bf16 %v1312, %v1312
      %v1345 = vpack.c.bf16 %v1313, %v1313
      %v1346 = vpack.c.bf16 %v1314, %v1314
      %v1347 = vpack.c.bf16 %v1315, %v1315
      %v1348 = vpack.c.bf16 %v1316, %v1316
      %v1349 = vpack.c.bf16 %v1317, %v1317
      %v1350 = vpack.c.bf16 %v1318, %v1318
      %v1351 = vpack.c.bf16 %v1319, %v1319
      %v1352 = vpack.c.bf16 %v1320, %v1320
      %v1353 = vpack.c.bf16 %v1321, %v1321
      %1386 = vrot.lane.b32.xlu0 %v1322, 20
      %v1387 = vpop.permute.xlu0 %1386
      %1388 = vrot.lane.b32.xlu0 %v1323, 20
      %v1389 = vpop.permute.xlu0 %1388
      %1390 = vrot.lane.b32.xlu0 %v1324, 20
      %v1391 = vpop.permute.xlu0 %1390
      %1392 = vrot.lane.b32.xlu0 %v1325, 20
      %v1393 = vpop.permute.xlu0 %1392
      %1394 = vrot.lane.b32.xlu0 %v1326, 20
      %v1395 = vpop.permute.xlu0 %1394
      %1396 = vrot.lane.b32.xlu0 %v1327, 20
      %v1397 = vpop.permute.xlu0 %1396
      %1398 = vrot.lane.b32.xlu0 %v1328, 20
      %v1399 = vpop.permute.xlu0 %1398
      %1400 = vrot.lane.b32.xlu0 %v1329, 20
      %v1401 = vpop.permute.xlu0 %1400
      %1402 = vrot.lane.b32.xlu0 %v1330, 20
      %v1403 = vpop.permute.xlu0 %1402
      %1404 = vrot.lane.b32.xlu0 %v1331, 20
      %v1405 = vpop.permute.xlu0 %1404
      %1406 = vrot.lane.b32.xlu0 %v1332, 20
      %v1407 = vpop.permute.xlu0 %1406
      %1408 = vrot.lane.b32.xlu0 %v1333, 20
      %v1409 = vpop.permute.xlu0 %1408
      %1410 = vrot.lane.b32.xlu0 %v1334, 20
      %v1411 = vpop.permute.xlu0 %1410
      %1412 = vrot.lane.b32.xlu0 %v1335, 20
      %v1413 = vpop.permute.xlu0 %1412
      %1414 = vrot.lane.b32.xlu0 %v1336, 20
      %v1415 = vpop.permute.xlu0 %1414
      %1416 = vrot.lane.b32.xlu0 %v1337, 20
      %v1417 = vpop.permute.xlu0 %1416
      %1418 = vrot.lane.b32.xlu0 %v1338, 20
      %v1419 = vpop.permute.xlu0 %1418
      %1420 = vrot.lane.b32.xlu0 %v1339, 20
      %v1421 = vpop.permute.xlu0 %1420
      %1422 = vrot.lane.b32.xlu0 %v1340, 20
      %v1423 = vpop.permute.xlu0 %1422
      %1424 = vrot.lane.b32.xlu0 %v1341, 20
      %v1425 = vpop.permute.xlu0 %1424
      %1426 = vrot.lane.b32.xlu0 %v1342, 20
      %v1427 = vpop.permute.xlu0 %1426
      %1428 = vrot.lane.b32.xlu0 %v1343, 20
      %v1429 = vpop.permute.xlu0 %1428
      %1430 = vrot.lane.b32.xlu0 %v1344, 20
      %v1431 = vpop.permute.xlu0 %1430
      %1432 = vrot.lane.b32.xlu0 %v1345, 20
      %v1433 = vpop.permute.xlu0 %1432
      %1434 = vrot.lane.b32.xlu0 %v1346, 20
      %v1435 = vpop.permute.xlu0 %1434
      %1436 = vrot.lane.b32.xlu0 %v1347, 20
      %v1437 = vpop.permute.xlu0 %1436
      %1438 = vrot.lane.b32.xlu0 %v1348, 20
      %v1439 = vpop.permute.xlu0 %1438
      %1440 = vrot.lane.b32.xlu0 %v1349, 20
      %v1441 = vpop.permute.xlu0 %1440
      %1442 = vrot.lane.b32.xlu0 %v1350, 20
      %v1443 = vpop.permute.xlu0 %1442
      %1444 = vrot.lane.b32.xlu0 %v1351, 20
      %v1445 = vpop.permute.xlu0 %1444
      %1446 = vrot.lane.b32.xlu0 %v1352, 20
      %v1447 = vpop.permute.xlu0 %1446
      %1448 = vrot.lane.b32.xlu0 %v1353, 20
      %v1449 = vpop.permute.xlu0 %1448
      %vm1482 = vcmask 191648
      %1483 = vst.msk [vmem:[#allocation3] sm:$0xf] %vm1482, %v1387
      %1484 = vst.msk [vmem:[#allocation3 + $0x4] sm:$0xf] %vm1482, %v1389
      %1485 = vst.msk [vmem:[#allocation3 + $0x8] sm:$0xf] %vm1482, %v1391
      %1486 = vst.msk [vmem:[#allocation3 + $0xc] sm:$0xf] %vm1482, %v1393
      %1487 = vst.msk [vmem:[#allocation3 + $0x10] sm:$0xf] %vm1482, %v1395
      %1488 = vst.msk [vmem:[#allocation3 + $0x14] sm:$0xf] %vm1482, %v1397
      %1489 = vst.msk [vmem:[#allocation3 + $0x18] sm:$0xf] %vm1482, %v1399
      %1490 = vst.msk [vmem:[#allocation3 + $0x1c] sm:$0xf] %vm1482, %v1401
      %1491 = vst.msk [vmem:[#allocation3 + $0x20] sm:$0xf] %vm1482, %v1403
      %1492 = vst.msk [vmem:[#allocation3 + $0x24] sm:$0xf] %vm1482, %v1405
      %1493 = vst.msk [vmem:[#allocation3 + $0x28] sm:$0xf] %vm1482, %v1407
      %1494 = vst.msk [vmem:[#allocation3 + $0x2c] sm:$0xf] %vm1482, %v1409
      %1495 = vst.msk [vmem:[#allocation3 + $0x30] sm:$0xf] %vm1482, %v1411
      %1496 = vst.msk [vmem:[#allocation3 + $0x34] sm:$0xf] %vm1482, %v1413
      %1497 = vst.msk [vmem:[#allocation3 + $0x38] sm:$0xf] %vm1482, %v1415
      %1498 = vst.msk [vmem:[#allocation3 + $0x3c] sm:$0xf] %vm1482, %v1417
      %1499 = vst.msk [vmem:[#allocation3 + $0x40] sm:$0xf] %vm1482, %v1419
      %1500 = vst.msk [vmem:[#allocation3 + $0x44] sm:$0xf] %vm1482, %v1421
      %1501 = vst.msk [vmem:[#allocation3 + $0x48] sm:$0xf] %vm1482, %v1423
      %1502 = vst.msk [vmem:[#allocation3 + $0x4c] sm:$0xf] %vm1482, %v1425
      %1503 = vst.msk [vmem:[#allocation3 + $0x50] sm:$0xf] %vm1482, %v1427
      %1504 = vst.msk [vmem:[#allocation3 + $0x54] sm:$0xf] %vm1482, %v1429
      %1505 = vst.msk [vmem:[#allocation3 + $0x58] sm:$0xf] %vm1482, %v1431
      %1506 = vst.msk [vmem:[#allocation3 + $0x5c] sm:$0xf] %vm1482, %v1433
      %1507 = vst.msk [vmem:[#allocation3 + $0x60] sm:$0xf] %vm1482, %v1435
      %1508 = vst.msk [vmem:[#allocation3 + $0x64] sm:$0xf] %vm1482, %v1437
      %1509 = vst.msk [vmem:[#allocation3 + $0x68] sm:$0xf] %vm1482, %v1439
      %1510 = vst.msk [vmem:[#allocation3 + $0x6c] sm:$0xf] %vm1482, %v1441
      %1511 = vst.msk [vmem:[#allocation3 + $0x70] sm:$0xf] %vm1482, %v1443
      %1512 = vst.msk [vmem:[#allocation3 + $0x74] sm:$0xf] %vm1482, %v1445
      %1513 = vst.msk [vmem:[#allocation3 + $0x78] sm:$0xf] %vm1482, %v1447
      %1514 = vst.msk [vmem:[#allocation3 + $0x7c] sm:$0xf] %vm1482, %v1449
      %s1515 = scalar_lea.vmem [#allocation2], 48
      %v1516 = vld [vmem:[%s1515] sm:$0xff]
      %v1517 = vld [vmem:[%s1515 + $0x8] sm:$0xff]
      %v1518 = vld [vmem:[%s1515 + $0x18] sm:$0xff]
      %v1519 = vld [vmem:[%s1515 + $0x20] sm:$0xff]
      %v1520 = vld [vmem:[%s1515 + $0x30] sm:$0xff]
      %v1521 = vld [vmem:[%s1515 + $0x38] sm:$0xff]
      %v1522 = vld [vmem:[%s1515 + $0x48] sm:$0xff]
      %v1523 = vld [vmem:[%s1515 + $0x50] sm:$0xff]
      %v1524 = vld [vmem:[%s1515 + $0x60] sm:$0xff]
      %v1525 = vld [vmem:[%s1515 + $0x68] sm:$0xff]
      %v1526 = vld [vmem:[%s1515 + $0x78] sm:$0xff]
      %v1527 = vld [vmem:[%s1515 + $0x80] sm:$0xff]
      %v1528 = vld [vmem:[%s1515 + $0x90] sm:$0xff]
      %v1529 = vld [vmem:[%s1515 + $0x98] sm:$0xff]
      %v1530 = vld [vmem:[%s1515 + $0xa8] sm:$0xff]
      %v1531 = vld [vmem:[%s1515 + $0xb0] sm:$0xff]
      %v1532 = vld [vmem:[%s1515 + $0xc0] sm:$0xff]
      %v1533 = vld [vmem:[%s1515 + $0xc8] sm:$0xff]
      %v1534 = vld [vmem:[%s1515 + $0xd8] sm:$0xff]
      %v1535 = vld [vmem:[%s1515 + $0xe0] sm:$0xff]
      %v1536 = vld [vmem:[%s1515 + $0xf0] sm:$0xff]
      %v1537 = vld [vmem:[%s1515 + $0xf8] sm:$0xff]
      %v1538 = vld [vmem:[%s1515 + $0x108] sm:$0xff]
      %v1539 = vld [vmem:[%s1515 + $0x110] sm:$0xff]
      %v1540 = vld [vmem:[%s1515 + $0x120] sm:$0xff]
      %v1541 = vld [vmem:[%s1515 + $0x128] sm:$0xff]
      %v1542 = vld [vmem:[%s1515 + $0x138] sm:$0xff]
      %v1543 = vld [vmem:[%s1515 + $0x140] sm:$0xff]
      %v1544 = vld [vmem:[%s1515 + $0x150] sm:$0xff]
      %v1545 = vld [vmem:[%s1515 + $0x158] sm:$0xff]
      %v1546 = vld [vmem:[%s1515 + $0x168] sm:$0xff]
      %v1547 = vld [vmem:[%s1515 + $0x170] sm:$0xff]
      %v1548 = vpack.c.bf16 %v1516, %v1516
      %v1549 = vpack.c.bf16 %v1517, %v1517
      %v1550 = vpack.c.bf16 %v1518, %v1518
      %v1551 = vpack.c.bf16 %v1519, %v1519
      %v1552 = vpack.c.bf16 %v1520, %v1520
      %v1553 = vpack.c.bf16 %v1521, %v1521
      %v1554 = vpack.c.bf16 %v1522, %v1522
      %v1555 = vpack.c.bf16 %v1523, %v1523
      %v1556 = vpack.c.bf16 %v1524, %v1524
      %v1557 = vpack.c.bf16 %v1525, %v1525
      %v1558 = vpack.c.bf16 %v1526, %v1526
      %v1559 = vpack.c.bf16 %v1527, %v1527
      %v1560 = vpack.c.bf16 %v1528, %v1528
      %v1561 = vpack.c.bf16 %v1529, %v1529
      %v1562 = vpack.c.bf16 %v1530, %v1530
      %v1563 = vpack.c.bf16 %v1531, %v1531
      %v1564 = vpack.c.bf16 %v1532, %v1532
      %v1565 = vpack.c.bf16 %v1533, %v1533
      %v1566 = vpack.c.bf16 %v1534, %v1534
      %v1567 = vpack.c.bf16 %v1535, %v1535
      %v1568 = vpack.c.bf16 %v1536, %v1536
      %v1569 = vpack.c.bf16 %v1537, %v1537
      %v1570 = vpack.c.bf16 %v1538, %v1538
      %v1571 = vpack.c.bf16 %v1539, %v1539
      %v1572 = vpack.c.bf16 %v1540, %v1540
      %v1573 = vpack.c.bf16 %v1541, %v1541
      %v1574 = vpack.c.bf16 %v1542, %v1542
      %v1575 = vpack.c.bf16 %v1543, %v1543
      %v1576 = vpack.c.bf16 %v1544, %v1544
      %v1577 = vpack.c.bf16 %v1545, %v1545
      %v1578 = vpack.c.bf16 %v1546, %v1546
      %v1579 = vpack.c.bf16 %v1547, %v1547
      %1612 = vrot.lane.b32.xlu0 %v1548, 24
      %v1613 = vpop.permute.xlu0 %1612
      %1614 = vrot.lane.b32.xlu0 %v1549, 24
      %v1615 = vpop.permute.xlu0 %1614
      %1616 = vrot.lane.b32.xlu0 %v1550, 24
      %v1617 = vpop.permute.xlu0 %1616
      %1618 = vrot.lane.b32.xlu0 %v1551, 24
      %v1619 = vpop.permute.xlu0 %1618
      %1620 = vrot.lane.b32.xlu0 %v1552, 24
      %v1621 = vpop.permute.xlu0 %1620
      %1622 = vrot.lane.b32.xlu0 %v1553, 24
      %v1623 = vpop.permute.xlu0 %1622
      %1624 = vrot.lane.b32.xlu0 %v1554, 24
      %v1625 = vpop.permute.xlu0 %1624
      %1626 = vrot.lane.b32.xlu0 %v1555, 24
      %v1627 = vpop.permute.xlu0 %1626
      %1628 = vrot.lane.b32.xlu0 %v1556, 24
      %v1629 = vpop.permute.xlu0 %1628
      %1630 = vrot.lane.b32.xlu0 %v1557, 24
      %v1631 = vpop.permute.xlu0 %1630
      %1632 = vrot.lane.b32.xlu0 %v1558, 24
      %v1633 = vpop.permute.xlu0 %1632
      %1634 = vrot.lane.b32.xlu0 %v1559, 24
      %v1635 = vpop.permute.xlu0 %1634
      %1636 = vrot.lane.b32.xlu0 %v1560, 24
      %v1637 = vpop.permute.xlu0 %1636
      %1638 = vrot.lane.b32.xlu0 %v1561, 24
      %v1639 = vpop.permute.xlu0 %1638
      %1640 = vrot.lane.b32.xlu0 %v1562, 24
      %v1641 = vpop.permute.xlu0 %1640
      %1642 = vrot.lane.b32.xlu0 %v1563, 24
      %v1643 = vpop.permute.xlu0 %1642
      %1644 = vrot.lane.b32.xlu0 %v1564, 24
      %v1645 = vpop.permute.xlu0 %1644
      %1646 = vrot.lane.b32.xlu0 %v1565, 24
      %v1647 = vpop.permute.xlu0 %1646
      %1648 = vrot.lane.b32.xlu0 %v1566, 24
      %v1649 = vpop.permute.xlu0 %1648
      %1650 = vrot.lane.b32.xlu0 %v1567, 24
      %v1651 = vpop.permute.xlu0 %1650
      %1652 = vrot.lane.b32.xlu0 %v1568, 24
      %v1653 = vpop.permute.xlu0 %1652
      %1654 = vrot.lane.b32.xlu0 %v1569, 24
      %v1655 = vpop.permute.xlu0 %1654
      %1656 = vrot.lane.b32.xlu0 %v1570, 24
      %v1657 = vpop.permute.xlu0 %1656
      %1658 = vrot.lane.b32.xlu0 %v1571, 24
      %v1659 = vpop.permute.xlu0 %1658
      %1660 = vrot.lane.b32.xlu0 %v1572, 24
      %v1661 = vpop.permute.xlu0 %1660
      %1662 = vrot.lane.b32.xlu0 %v1573, 24
      %v1663 = vpop.permute.xlu0 %1662
      %1664 = vrot.lane.b32.xlu0 %v1574, 24
      %v1665 = vpop.permute.xlu0 %1664
      %1666 = vrot.lane.b32.xlu0 %v1575, 24
      %v1667 = vpop.permute.xlu0 %1666
      %1668 = vrot.lane.b32.xlu0 %v1576, 24
      %v1669 = vpop.permute.xlu0 %1668
      %1670 = vrot.lane.b32.xlu0 %v1577, 24
      %v1671 = vpop.permute.xlu0 %1670
      %1672 = vrot.lane.b32.xlu0 %v1578, 24
      %v1673 = vpop.permute.xlu0 %1672
      %1674 = vrot.lane.b32.xlu0 %v1579, 24
      %v1675 = vpop.permute.xlu0 %1674
      %vm1708 = vcmask 224448
      %1709 = vst.msk [vmem:[#allocation3] sm:$0xf] %vm1708, %v1613
      %1710 = vst.msk [vmem:[#allocation3 + $0x4] sm:$0xf] %vm1708, %v1615
      %1711 = vst.msk [vmem:[#allocation3 + $0x8] sm:$0xf] %vm1708, %v1617
      %1712 = vst.msk [vmem:[#allocation3 + $0xc] sm:$0xf] %vm1708, %v1619
      %1713 = vst.msk [vmem:[#allocation3 + $0x10] sm:$0xf] %vm1708, %v1621
      %1714 = vst.msk [vmem:[#allocation3 + $0x14] sm:$0xf] %vm1708, %v1623
      %1715 = vst.msk [vmem:[#allocation3 + $0x18] sm:$0xf] %vm1708, %v1625
      %1716 = vst.msk [vmem:[#allocation3 + $0x1c] sm:$0xf] %vm1708, %v1627
      %1717 = vst.msk [vmem:[#allocation3 + $0x20] sm:$0xf] %vm1708, %v1629
      %1718 = vst.msk [vmem:[#allocation3 + $0x24] sm:$0xf] %vm1708, %v1631
      %1719 = vst.msk [vmem:[#allocation3 + $0x28] sm:$0xf] %vm1708, %v1633
      %1720 = vst.msk [vmem:[#allocation3 + $0x2c] sm:$0xf] %vm1708, %v1635
      %1721 = vst.msk [vmem:[#allocation3 + $0x30] sm:$0xf] %vm1708, %v1637
      %1722 = vst.msk [vmem:[#allocation3 + $0x34] sm:$0xf] %vm1708, %v1639
      %1723 = vst.msk [vmem:[#allocation3 + $0x38] sm:$0xf] %vm1708, %v1641
      %1724 = vst.msk [vmem:[#allocation3 + $0x3c] sm:$0xf] %vm1708, %v1643
      %1725 = vst.msk [vmem:[#allocation3 + $0x40] sm:$0xf] %vm1708, %v1645
      %1726 = vst.msk [vmem:[#allocation3 + $0x44] sm:$0xf] %vm1708, %v1647
      %1727 = vst.msk [vmem:[#allocation3 + $0x48] sm:$0xf] %vm1708, %v1649
      %1728 = vst.msk [vmem:[#allocation3 + $0x4c] sm:$0xf] %vm1708, %v1651
      %1729 = vst.msk [vmem:[#allocation3 + $0x50] sm:$0xf] %vm1708, %v1653
      %1730 = vst.msk [vmem:[#allocation3 + $0x54] sm:$0xf] %vm1708, %v1655
      %1731 = vst.msk [vmem:[#allocation3 + $0x58] sm:$0xf] %vm1708, %v1657
      %1732 = vst.msk [vmem:[#allocation3 + $0x5c] sm:$0xf] %vm1708, %v1659
      %1733 = vst.msk [vmem:[#allocation3 + $0x60] sm:$0xf] %vm1708, %v1661
      %1734 = vst.msk [vmem:[#allocation3 + $0x64] sm:$0xf] %vm1708, %v1663
      %1735 = vst.msk [vmem:[#allocation3 + $0x68] sm:$0xf] %vm1708, %v1665
      %1736 = vst.msk [vmem:[#allocation3 + $0x6c] sm:$0xf] %vm1708, %v1667
      %1737 = vst.msk [vmem:[#allocation3 + $0x70] sm:$0xf] %vm1708, %v1669
      %1738 = vst.msk [vmem:[#allocation3 + $0x74] sm:$0xf] %vm1708, %v1671
      %1739 = vst.msk [vmem:[#allocation3 + $0x78] sm:$0xf] %vm1708, %v1673
      %1740 = vst.msk [vmem:[#allocation3 + $0x7c] sm:$0xf] %vm1708, %v1675
      %v1741 = vld [vmem:[%s1515 + $0x1] sm:$0xff]
      %v1742 = vld [vmem:[%s1515 + $0x9] sm:$0xff]
      %v1743 = vld [vmem:[%s1515 + $0x19] sm:$0xff]
      %v1744 = vld [vmem:[%s1515 + $0x21] sm:$0xff]
      %v1745 = vld [vmem:[%s1515 + $0x31] sm:$0xff]
      %v1746 = vld [vmem:[%s1515 + $0x39] sm:$0xff]
      %v1747 = vld [vmem:[%s1515 + $0x49] sm:$0xff]
      %v1748 = vld [vmem:[%s1515 + $0x51] sm:$0xff]
      %v1749 = vld [vmem:[%s1515 + $0x61] sm:$0xff]
      %v1750 = vld [vmem:[%s1515 + $0x69] sm:$0xff]
      %v1751 = vld [vmem:[%s1515 + $0x79] sm:$0xff]
      %v1752 = vld [vmem:[%s1515 + $0x81] sm:$0xff]
      %v1753 = vld [vmem:[%s1515 + $0x91] sm:$0xff]
      %v1754 = vld [vmem:[%s1515 + $0x99] sm:$0xff]
      %v1755 = vld [vmem:[%s1515 + $0xa9] sm:$0xff]
      %v1756 = vld [vmem:[%s1515 + $0xb1] sm:$0xff]
      %v1757 = vld [vmem:[%s1515 + $0xc1] sm:$0xff]
      %v1758 = vld [vmem:[%s1515 + $0xc9] sm:$0xff]
      %v1759 = vld [vmem:[%s1515 + $0xd9] sm:$0xff]
      %v1760 = vld [vmem:[%s1515 + $0xe1] sm:$0xff]
      %v1761 = vld [vmem:[%s1515 + $0xf1] sm:$0xff]
      %v1762 = vld [vmem:[%s1515 + $0xf9] sm:$0xff]
      %v1763 = vld [vmem:[%s1515 + $0x109] sm:$0xff]
      %v1764 = vld [vmem:[%s1515 + $0x111] sm:$0xff]
      %v1765 = vld [vmem:[%s1515 + $0x121] sm:$0xff]
      %v1766 = vld [vmem:[%s1515 + $0x129] sm:$0xff]
      %v1767 = vld [vmem:[%s1515 + $0x139] sm:$0xff]
      %v1768 = vld [vmem:[%s1515 + $0x141] sm:$0xff]
      %v1769 = vld [vmem:[%s1515 + $0x151] sm:$0xff]
      %v1770 = vld [vmem:[%s1515 + $0x159] sm:$0xff]
      %v1771 = vld [vmem:[%s1515 + $0x169] sm:$0xff]
      %v1772 = vld [vmem:[%s1515 + $0x171] sm:$0xff]
      %v1773 = vpack.c.bf16 %v1741, %v1741
      %v1774 = vpack.c.bf16 %v1742, %v1742
      %v1775 = vpack.c.bf16 %v1743, %v1743
      %v1776 = vpack.c.bf16 %v1744, %v1744
      %v1777 = vpack.c.bf16 %v1745, %v1745
      %v1778 = vpack.c.bf16 %v1746, %v1746
      %v1779 = vpack.c.bf16 %v1747, %v1747
      %v1780 = vpack.c.bf16 %v1748, %v1748
      %v1781 = vpack.c.bf16 %v1749, %v1749
      %v1782 = vpack.c.bf16 %v1750, %v1750
      %v1783 = vpack.c.bf16 %v1751, %v1751
      %v1784 = vpack.c.bf16 %v1752, %v1752
      %v1785 = vpack.c.bf16 %v1753, %v1753
      %v1786 = vpack.c.bf16 %v1754, %v1754
      %v1787 = vpack.c.bf16 %v1755, %v1755
      %v1788 = vpack.c.bf16 %v1756, %v1756
      %v1789 = vpack.c.bf16 %v1757, %v1757
      %v1790 = vpack.c.bf16 %v1758, %v1758
      %v1791 = vpack.c.bf16 %v1759, %v1759
      %v1792 = vpack.c.bf16 %v1760, %v1760
      %v1793 = vpack.c.bf16 %v1761, %v1761
      %v1794 = vpack.c.bf16 %v1762, %v1762
      %v1795 = vpack.c.bf16 %v1763, %v1763
      %v1796 = vpack.c.bf16 %v1764, %v1764
      %v1797 = vpack.c.bf16 %v1765, %v1765
      %v1798 = vpack.c.bf16 %v1766, %v1766
      %v1799 = vpack.c.bf16 %v1767, %v1767
      %v1800 = vpack.c.bf16 %v1768, %v1768
      %v1801 = vpack.c.bf16 %v1769, %v1769
      %v1802 = vpack.c.bf16 %v1770, %v1770
      %v1803 = vpack.c.bf16 %v1771, %v1771
      %v1804 = vpack.c.bf16 %v1772, %v1772
      %1837 = vrot.lane.b32.xlu0 %v1773, 28
      %v1838 = vpop.permute.xlu0 %1837
      %1839 = vrot.lane.b32.xlu0 %v1774, 28
      %v1840 = vpop.permute.xlu0 %1839
      %1841 = vrot.lane.b32.xlu0 %v1775, 28
      %v1842 = vpop.permute.xlu0 %1841
      %1843 = vrot.lane.b32.xlu0 %v1776, 28
      %v1844 = vpop.permute.xlu0 %1843
      %1845 = vrot.lane.b32.xlu0 %v1777, 28
      %v1846 = vpop.permute.xlu0 %1845
      %1847 = vrot.lane.b32.xlu0 %v1778, 28
      %v1848 = vpop.permute.xlu0 %1847
      %1849 = vrot.lane.b32.xlu0 %v1779, 28
      %v1850 = vpop.permute.xlu0 %1849
      %1851 = vrot.lane.b32.xlu0 %v1780, 28
      %v1852 = vpop.permute.xlu0 %1851
      %1853 = vrot.lane.b32.xlu0 %v1781, 28
      %v1854 = vpop.permute.xlu0 %1853
      %1855 = vrot.lane.b32.xlu0 %v1782, 28
      %v1856 = vpop.permute.xlu0 %1855
      %1857 = vrot.lane.b32.xlu0 %v1783, 28
      %v1858 = vpop.permute.xlu0 %1857
      %1859 = vrot.lane.b32.xlu0 %v1784, 28
      %v1860 = vpop.permute.xlu0 %1859
      %1861 = vrot.lane.b32.xlu0 %v1785, 28
      %v1862 = vpop.permute.xlu0 %1861
      %1863 = vrot.lane.b32.xlu0 %v1786, 28
      %v1864 = vpop.permute.xlu0 %1863
      %1865 = vrot.lane.b32.xlu0 %v1787, 28
      %v1866 = vpop.permute.xlu0 %1865
      %1867 = vrot.lane.b32.xlu0 %v1788, 28
      %v1868 = vpop.permute.xlu0 %1867
      %1869 = vrot.lane.b32.xlu0 %v1789, 28
      %v1870 = vpop.permute.xlu0 %1869
      %1871 = vrot.lane.b32.xlu0 %v1790, 28
      %v1872 = vpop.permute.xlu0 %1871
      %1873 = vrot.lane.b32.xlu0 %v1791, 28
      %v1874 = vpop.permute.xlu0 %1873
      %1875 = vrot.lane.b32.xlu0 %v1792, 28
      %v1876 = vpop.permute.xlu0 %1875
      %1877 = vrot.lane.b32.xlu0 %v1793, 28
      %v1878 = vpop.permute.xlu0 %1877
      %1879 = vrot.lane.b32.xlu0 %v1794, 28
      %v1880 = vpop.permute.xlu0 %1879
      %1881 = vrot.lane.b32.xlu0 %v1795, 28
      %v1882 = vpop.permute.xlu0 %1881
      %1883 = vrot.lane.b32.xlu0 %v1796, 28
      %v1884 = vpop.permute.xlu0 %1883
      %1885 = vrot.lane.b32.xlu0 %v1797, 28
      %v1886 = vpop.permute.xlu0 %1885
      %1887 = vrot.lane.b32.xlu0 %v1798, 28
      %v1888 = vpop.permute.xlu0 %1887
      %1889 = vrot.lane.b32.xlu0 %v1799, 28
      %v1890 = vpop.permute.xlu0 %1889
      %1891 = vrot.lane.b32.xlu0 %v1800, 28
      %v1892 = vpop.permute.xlu0 %1891
      %1893 = vrot.lane.b32.xlu0 %v1801, 28
      %v1894 = vpop.permute.xlu0 %1893
      %1895 = vrot.lane.b32.xlu0 %v1802, 28
      %v1896 = vpop.permute.xlu0 %1895
      %1897 = vrot.lane.b32.xlu0 %v1803, 28
      %v1898 = vpop.permute.xlu0 %1897
      %1899 = vrot.lane.b32.xlu0 %v1804, 28
      %v1900 = vpop.permute.xlu0 %1899
      %vm1933 = vcmask 257248
      %1934 = vst.msk [vmem:[#allocation3] sm:$0xf] %vm1933, %v1838
      %1935 = vst.msk [vmem:[#allocation3 + $0x4] sm:$0xf] %vm1933, %v1840
      %1936 = vst.msk [vmem:[#allocation3 + $0x8] sm:$0xf] %vm1933, %v1842
      %1937 = vst.msk [vmem:[#allocation3 + $0xc] sm:$0xf] %vm1933, %v1844
      %1938 = vst.msk [vmem:[#allocation3 + $0x10] sm:$0xf] %vm1933, %v1846
      %1939 = vst.msk [vmem:[#allocation3 + $0x14] sm:$0xf] %vm1933, %v1848
      %1940 = vst.msk [vmem:[#allocation3 + $0x18] sm:$0xf] %vm1933, %v1850
      %1941 = vst.msk [vmem:[#allocation3 + $0x1c] sm:$0xf] %vm1933, %v1852
      %1942 = vst.msk [vmem:[#allocation3 + $0x20] sm:$0xf] %vm1933, %v1854
      %1943 = vst.msk [vmem:[#allocation3 + $0x24] sm:$0xf] %vm1933, %v1856
      %1944 = vst.msk [vmem:[#allocation3 + $0x28] sm:$0xf] %vm1933, %v1858
      %1945 = vst.msk [vmem:[#allocation3 + $0x2c] sm:$0xf] %vm1933, %v1860
      %1946 = vst.msk [vmem:[#allocation3 + $0x30] sm:$0xf] %vm1933, %v1862
      %1947 = vst.msk [vmem:[#allocation3 + $0x34] sm:$0xf] %vm1933, %v1864
      %1948 = vst.msk [vmem:[#allocation3 + $0x38] sm:$0xf] %vm1933, %v1866
      %1949 = vst.msk [vmem:[#allocation3 + $0x3c] sm:$0xf] %vm1933, %v1868
      %1950 = vst.msk [vmem:[#allocation3 + $0x40] sm:$0xf] %vm1933, %v1870
      %1951 = vst.msk [vmem:[#allocation3 + $0x44] sm:$0xf] %vm1933, %v1872
      %1952 = vst.msk [vmem:[#allocation3 + $0x48] sm:$0xf] %vm1933, %v1874
      %1953 = vst.msk [vmem:[#allocation3 + $0x4c] sm:$0xf] %vm1933, %v1876
      %1954 = vst.msk [vmem:[#allocation3 + $0x50] sm:$0xf] %vm1933, %v1878
      %1955 = vst.msk [vmem:[#allocation3 + $0x54] sm:$0xf] %vm1933, %v1880
      %1956 = vst.msk [vmem:[#allocation3 + $0x58] sm:$0xf] %vm1933, %v1882
      %1957 = vst.msk [vmem:[#allocation3 + $0x5c] sm:$0xf] %vm1933, %v1884
      %1958 = vst.msk [vmem:[#allocation3 + $0x60] sm:$0xf] %vm1933, %v1886
      %1959 = vst.msk [vmem:[#allocation3 + $0x64] sm:$0xf] %vm1933, %v1888
      %1960 = vst.msk [vmem:[#allocation3 + $0x68] sm:$0xf] %vm1933, %v1890
      %1961 = vst.msk [vmem:[#allocation3 + $0x6c] sm:$0xf] %vm1933, %v1892
      %1962 = vst.msk [vmem:[#allocation3 + $0x70] sm:$0xf] %vm1933, %v1894
      %1963 = vst.msk [vmem:[#allocation3 + $0x74] sm:$0xf] %vm1933, %v1896
      %1964 = vst.msk [vmem:[#allocation3 + $0x78] sm:$0xf] %vm1933, %v1898
      %1965 = vst.msk [vmem:[#allocation3 + $0x7c] sm:$0xf] %vm1933, %v1900
      %v1966 = vld [vmem:[%s1515 + $0x2] sm:$0xff]
      %v1967 = vld [vmem:[%s1515 + $0xa] sm:$0xff]
      %v1968 = vld [vmem:[%s1515 + $0x1a] sm:$0xff]
      %v1969 = vld [vmem:[%s1515 + $0x22] sm:$0xff]
      %v1970 = vld [vmem:[%s1515 + $0x32] sm:$0xff]
      %v1971 = vld [vmem:[%s1515 + $0x3a] sm:$0xff]
      %v1972 = vld [vmem:[%s1515 + $0x4a] sm:$0xff]
      %v1973 = vld [vmem:[%s1515 + $0x52] sm:$0xff]
      %v1974 = vld [vmem:[%s1515 + $0x62] sm:$0xff]
      %v1975 = vld [vmem:[%s1515 + $0x6a] sm:$0xff]
      %v1976 = vld [vmem:[%s1515 + $0x7a] sm:$0xff]
      %v1977 = vld [vmem:[%s1515 + $0x82] sm:$0xff]
      %v1978 = vld [vmem:[%s1515 + $0x92] sm:$0xff]
      %v1979 = vld [vmem:[%s1515 + $0x9a] sm:$0xff]
      %v1980 = vld [vmem:[%s1515 + $0xaa] sm:$0xff]
      %v1981 = vld [vmem:[%s1515 + $0xb2] sm:$0xff]
      %v1982 = vld [vmem:[%s1515 + $0xc2] sm:$0xff]
      %v1983 = vld [vmem:[%s1515 + $0xca] sm:$0xff]
      %v1984 = vld [vmem:[%s1515 + $0xda] sm:$0xff]
      %v1985 = vld [vmem:[%s1515 + $0xe2] sm:$0xff]
      %v1986 = vld [vmem:[%s1515 + $0xf2] sm:$0xff]
      %v1987 = vld [vmem:[%s1515 + $0xfa] sm:$0xff]
      %v1988 = vld [vmem:[%s1515 + $0x10a] sm:$0xff]
      %v1989 = vld [vmem:[%s1515 + $0x112] sm:$0xff]
      %v1990 = vld [vmem:[%s1515 + $0x122] sm:$0xff]
      %v1991 = vld [vmem:[%s1515 + $0x12a] sm:$0xff]
      %v1992 = vld [vmem:[%s1515 + $0x13a] sm:$0xff]
      %v1993 = vld [vmem:[%s1515 + $0x142] sm:$0xff]
      %v1994 = vld [vmem:[%s1515 + $0x152] sm:$0xff]
      %v1995 = vld [vmem:[%s1515 + $0x15a] sm:$0xff]
      %v1996 = vld [vmem:[%s1515 + $0x16a] sm:$0xff]
      %v1997 = vld [vmem:[%s1515 + $0x172] sm:$0xff]
      %v1998 = vpack.c.bf16 %v1966, %v1966
      %v1999 = vpack.c.bf16 %v1967, %v1967
      %v2000 = vpack.c.bf16 %v1968, %v1968
      %v2001 = vpack.c.bf16 %v1969, %v1969
      %v2002 = vpack.c.bf16 %v1970, %v1970
      %v2003 = vpack.c.bf16 %v1971, %v1971
      %v2004 = vpack.c.bf16 %v1972, %v1972
      %v2005 = vpack.c.bf16 %v1973, %v1973
      %v2006 = vpack.c.bf16 %v1974, %v1974
      %v2007 = vpack.c.bf16 %v1975, %v1975
      %v2008 = vpack.c.bf16 %v1976, %v1976
      %v2009 = vpack.c.bf16 %v1977, %v1977
      %v2010 = vpack.c.bf16 %v1978, %v1978
      %v2011 = vpack.c.bf16 %v1979, %v1979
      %v2012 = vpack.c.bf16 %v1980, %v1980
      %v2013 = vpack.c.bf16 %v1981, %v1981
      %v2014 = vpack.c.bf16 %v1982, %v1982
      %v2015 = vpack.c.bf16 %v1983, %v1983
      %v2016 = vpack.c.bf16 %v1984, %v1984
      %v2017 = vpack.c.bf16 %v1985, %v1985
      %v2018 = vpack.c.bf16 %v1986, %v1986
      %v2019 = vpack.c.bf16 %v1987, %v1987
      %v2020 = vpack.c.bf16 %v1988, %v1988
      %v2021 = vpack.c.bf16 %v1989, %v1989
      %v2022 = vpack.c.bf16 %v1990, %v1990
      %v2023 = vpack.c.bf16 %v1991, %v1991
      %v2024 = vpack.c.bf16 %v1992, %v1992
      %v2025 = vpack.c.bf16 %v1993, %v1993
      %v2026 = vpack.c.bf16 %v1994, %v1994
      %v2027 = vpack.c.bf16 %v1995, %v1995
      %v2028 = vpack.c.bf16 %v1996, %v1996
      %v2029 = vpack.c.bf16 %v1997, %v1997
      %2062 = vrot.lane.b32.xlu0 %v1998, 32
      %v2063 = vpop.permute.xlu0 %2062
      %2064 = vrot.lane.b32.xlu0 %v1999, 32
      %v2065 = vpop.permute.xlu0 %2064
      %2066 = vrot.lane.b32.xlu0 %v2000, 32
      %v2067 = vpop.permute.xlu0 %2066
      %2068 = vrot.lane.b32.xlu0 %v2001, 32
      %v2069 = vpop.permute.xlu0 %2068
      %2070 = vrot.lane.b32.xlu0 %v2002, 32
      %v2071 = vpop.permute.xlu0 %2070
      %2072 = vrot.lane.b32.xlu0 %v2003, 32
      %v2073 = vpop.permute.xlu0 %2072
      %2074 = vrot.lane.b32.xlu0 %v2004, 32
      %v2075 = vpop.permute.xlu0 %2074
      %2076 = vrot.lane.b32.xlu0 %v2005, 32
      %v2077 = vpop.permute.xlu0 %2076
      %2078 = vrot.lane.b32.xlu0 %v2006, 32
      %v2079 = vpop.permute.xlu0 %2078
      %2080 = vrot.lane.b32.xlu0 %v2007, 32
      %v2081 = vpop.permute.xlu0 %2080
      %2082 = vrot.lane.b32.xlu0 %v2008, 32
      %v2083 = vpop.permute.xlu0 %2082
      %2084 = vrot.lane.b32.xlu0 %v2009, 32
      %v2085 = vpop.permute.xlu0 %2084
      %2086 = vrot.lane.b32.xlu0 %v2010, 32
      %v2087 = vpop.permute.xlu0 %2086
      %2088 = vrot.lane.b32.xlu0 %v2011, 32
      %v2089 = vpop.permute.xlu0 %2088
      %2090 = vrot.lane.b32.xlu0 %v2012, 32
      %v2091 = vpop.permute.xlu0 %2090
      %2092 = vrot.lane.b32.xlu0 %v2013, 32
      %v2093 = vpop.permute.xlu0 %2092
      %2094 = vrot.lane.b32.xlu0 %v2014, 32
      %v2095 = vpop.permute.xlu0 %2094
      %2096 = vrot.lane.b32.xlu0 %v2015, 32
      %v2097 = vpop.permute.xlu0 %2096
      %2098 = vrot.lane.b32.xlu0 %v2016, 32
      %v2099 = vpop.permute.xlu0 %2098
      %2100 = vrot.lane.b32.xlu0 %v2017, 32
      %v2101 = vpop.permute.xlu0 %2100
      %2102 = vrot.lane.b32.xlu0 %v2018, 32
      %v2103 = vpop.permute.xlu0 %2102
      %2104 = vrot.lane.b32.xlu0 %v2019, 32
      %v2105 = vpop.permute.xlu0 %2104
      %2106 = vrot.lane.b32.xlu0 %v2020, 32
      %v2107 = vpop.permute.xlu0 %2106
      %2108 = vrot.lane.b32.xlu0 %v2021, 32
      %v2109 = vpop.permute.xlu0 %2108
      %2110 = vrot.lane.b32.xlu0 %v2022, 32
      %v2111 = vpop.permute.xlu0 %2110
      %2112 = vrot.lane.b32.xlu0 %v2023, 32
      %v2113 = vpop.permute.xlu0 %2112
      %2114 = vrot.lane.b32.xlu0 %v2024, 32
      %v2115 = vpop.permute.xlu0 %2114
      %2116 = vrot.lane.b32.xlu0 %v2025, 32
      %v2117 = vpop.permute.xlu0 %2116
      %2118 = vrot.lane.b32.xlu0 %v2026, 32
      %v2119 = vpop.permute.xlu0 %2118
      %2120 = vrot.lane.b32.xlu0 %v2027, 32
      %v2121 = vpop.permute.xlu0 %2120
      %2122 = vrot.lane.b32.xlu0 %v2028, 32
      %v2123 = vpop.permute.xlu0 %2122
      %2124 = vrot.lane.b32.xlu0 %v2029, 32
      %v2125 = vpop.permute.xlu0 %2124
      %vm2158 = vcmask 290048
      %2159 = vst.msk [vmem:[#allocation3] sm:$0xf] %vm2158, %v2063
      %2160 = vst.msk [vmem:[#allocation3 + $0x4] sm:$0xf] %vm2158, %v2065
      %2161 = vst.msk [vmem:[#allocation3 + $0x8] sm:$0xf] %vm2158, %v2067
      %2162 = vst.msk [vmem:[#allocation3 + $0xc] sm:$0xf] %vm2158, %v2069
      %2163 = vst.msk [vmem:[#allocation3 + $0x10] sm:$0xf] %vm2158, %v2071
      %2164 = vst.msk [vmem:[#allocation3 + $0x14] sm:$0xf] %vm2158, %v2073
      %2165 = vst.msk [vmem:[#allocation3 + $0x18] sm:$0xf] %vm2158, %v2075
      %2166 = vst.msk [vmem:[#allocation3 + $0x1c] sm:$0xf] %vm2158, %v2077
      %2167 = vst.msk [vmem:[#allocation3 + $0x20] sm:$0xf] %vm2158, %v2079
      %2168 = vst.msk [vmem:[#allocation3 + $0x24] sm:$0xf] %vm2158, %v2081
      %2169 = vst.msk [vmem:[#allocation3 + $0x28] sm:$0xf] %vm2158, %v2083
      %2170 = vst.msk [vmem:[#allocation3 + $0x2c] sm:$0xf] %vm2158, %v2085
      %2171 = vst.msk [vmem:[#allocation3 + $0x30] sm:$0xf] %vm2158, %v2087
      %2172 = vst.msk [vmem:[#allocation3 + $0x34] sm:$0xf] %vm2158, %v2089
      %2173 = vst.msk [vmem:[#allocation3 + $0x38] sm:$0xf] %vm2158, %v2091
      %2174 = vst.msk [vmem:[#allocation3 + $0x3c] sm:$0xf] %vm2158, %v2093
      %2175 = vst.msk [vmem:[#allocation3 + $0x40] sm:$0xf] %vm2158, %v2095
      %2176 = vst.msk [vmem:[#allocation3 + $0x44] sm:$0xf] %vm2158, %v2097
      %2177 = vst.msk [vmem:[#allocation3 + $0x48] sm:$0xf] %vm2158, %v2099
      %2178 = vst.msk [vmem:[#allocation3 + $0x4c] sm:$0xf] %vm2158, %v2101
      %2179 = vst.msk [vmem:[#allocation3 + $0x50] sm:$0xf] %vm2158, %v2103
      %2180 = vst.msk [vmem:[#allocation3 + $0x54] sm:$0xf] %vm2158, %v2105
      %2181 = vst.msk [vmem:[#allocation3 + $0x58] sm:$0xf] %vm2158, %v2107
      %2182 = vst.msk [vmem:[#allocation3 + $0x5c] sm:$0xf] %vm2158, %v2109
      %2183 = vst.msk [vmem:[#allocation3 + $0x60] sm:$0xf] %vm2158, %v2111
      %2184 = vst.msk [vmem:[#allocation3 + $0x64] sm:$0xf] %vm2158, %v2113
      %2185 = vst.msk [vmem:[#allocation3 + $0x68] sm:$0xf] %vm2158, %v2115
      %2186 = vst.msk [vmem:[#allocation3 + $0x6c] sm:$0xf] %vm2158, %v2117
      %2187 = vst.msk [vmem:[#allocation3 + $0x70] sm:$0xf] %vm2158, %v2119
      %2188 = vst.msk [vmem:[#allocation3 + $0x74] sm:$0xf] %vm2158, %v2121
      %2189 = vst.msk [vmem:[#allocation3 + $0x78] sm:$0xf] %vm2158, %v2123
      %2190 = vst.msk [vmem:[#allocation3 + $0x7c] sm:$0xf] %vm2158, %v2125
      %v2191 = vld [vmem:[#allocation3] sm:$0xf]
      %v2192 = vld [vmem:[#allocation3 + $0x4] sm:$0xf]
      %v2193 = vld [vmem:[#allocation3 + $0x8] sm:$0xf]
      %v2194 = vld [vmem:[#allocation3 + $0xc] sm:$0xf]
      %v2195 = vld [vmem:[#allocation3 + $0x10] sm:$0xf]
      %v2196 = vld [vmem:[#allocation3 + $0x14] sm:$0xf]
      %v2197 = vld [vmem:[#allocation3 + $0x18] sm:$0xf]
      %v2198 = vld [vmem:[#allocation3 + $0x1c] sm:$0xf]
      %v2199 = vld [vmem:[#allocation3 + $0x20] sm:$0xf]
      %v2200 = vld [vmem:[#allocation3 + $0x24] sm:$0xf]
      %v2201 = vld [vmem:[#allocation3 + $0x28] sm:$0xf]
      %v2202 = vld [vmem:[#allocation3 + $0x2c] sm:$0xf]
      %v2203 = vld [vmem:[#allocation3 + $0x30] sm:$0xf]
      %v2204 = vld [vmem:[#allocation3 + $0x34] sm:$0xf]
      %v2205 = vld [vmem:[#allocation3 + $0x38] sm:$0xf]
      %v2206 = vld [vmem:[#allocation3 + $0x3c] sm:$0xf]
      %v2207 = vld [vmem:[#allocation3 + $0x40] sm:$0xf]
      %v2208 = vld [vmem:[#allocation3 + $0x44] sm:$0xf]
      %v2209 = vld [vmem:[#allocation3 + $0x48] sm:$0xf]
      %v2210 = vld [vmem:[#allocation3 + $0x4c] sm:$0xf]
      %v2211 = vld [vmem:[#allocation3 + $0x50] sm:$0xf]
      %v2212 = vld [vmem:[#allocation3 + $0x54] sm:$0xf]
      %v2213 = vld [vmem:[#allocation3 + $0x58] sm:$0xf]
      %v2214 = vld [vmem:[#allocation3 + $0x5c] sm:$0xf]
      %v2215 = vld [vmem:[#allocation3 + $0x60] sm:$0xf]
      %v2216 = vld [vmem:[#allocation3 + $0x64] sm:$0xf]
      %v2217 = vld [vmem:[#allocation3 + $0x68] sm:$0xf]
      %v2218 = vld [vmem:[#allocation3 + $0x6c] sm:$0xf]
      %v2219 = vld [vmem:[#allocation3 + $0x70] sm:$0xf]
      %v2220 = vld [vmem:[#allocation3 + $0x74] sm:$0xf]
      %v2221 = vld [vmem:[#allocation3 + $0x78] sm:$0xf]
      %v2222 = vld [vmem:[#allocation3 + $0x7c] sm:$0xf]
      %v2223 = vld [vmem:[%s1] sm:$0xf]
      %v2224 = vld [vmem:[%s1 + $0x4] sm:$0xf]
      %v2225 = vld [vmem:[%s1 + $0x8] sm:$0xf]
      %v2226 = vld [vmem:[%s1 + $0xc] sm:$0xf]
      %v2227 = vld [vmem:[%s1 + $0x10] sm:$0x3]
      %v2228 = vld [vmem:[%s2] sm:$0x1]
      %v2230 = vperm.slane %v2228, 0
      %v2264 = vunpack.c.l.b16 %v2191
      %v2265 = vunpack.c.l.b16 %v2192
      %v2266 = vunpack.c.l.b16 %v2193
      %v2267 = vunpack.c.l.b16 %v2194
      %v2268 = vunpack.c.l.b16 %v2195
      %v2269 = vunpack.c.l.b16 %v2196
      %v2270 = vunpack.c.l.b16 %v2197
      %v2271 = vunpack.c.l.b16 %v2198
      %v2272 = vunpack.c.l.b16 %v2199
      %v2273 = vunpack.c.l.b16 %v2200
      %v2274 = vunpack.c.l.b16 %v2201
      %v2275 = vunpack.c.l.b16 %v2202
      %v2276 = vunpack.c.l.b16 %v2203
      %v2277 = vunpack.c.l.b16 %v2204
      %v2278 = vunpack.c.l.b16 %v2205
      %v2279 = vunpack.c.l.b16 %v2206
      %v2280 = vunpack.c.l.b16 %v2207
      %v2281 = vunpack.c.l.b16 %v2208
      %v2282 = vunpack.c.l.b16 %v2209
      %v2283 = vunpack.c.l.b16 %v2210
      %v2284 = vunpack.c.l.b16 %v2211
      %v2285 = vunpack.c.l.b16 %v2212
      %v2286 = vunpack.c.l.b16 %v2213
      %v2287 = vunpack.c.l.b16 %v2214
      %v2288 = vunpack.c.l.b16 %v2215
      %v2289 = vunpack.c.l.b16 %v2216
      %v2290 = vunpack.c.l.b16 %v2217
      %v2291 = vunpack.c.l.b16 %v2218
      %v2292 = vunpack.c.l.b16 %v2219
      %v2293 = vunpack.c.l.b16 %v2220
      %v2294 = vunpack.c.l.b16 %v2221
      %v2295 = vunpack.c.l.b16 %v2222
      %v2296 = vpack.c.b16 %v2265, %v2264
      %v2297 = vpack.c.b16 %v2267, %v2266
      %v2298 = vpack.c.b16 %v2269, %v2268
      %v2299 = vpack.c.b16 %v2271, %v2270
      %v2300 = vpack.c.b16 %v2273, %v2272
      %v2301 = vpack.c.b16 %v2275, %v2274
      %v2302 = vpack.c.b16 %v2277, %v2276
      %v2303 = vpack.c.b16 %v2279, %v2278
      %v2304 = vpack.c.b16 %v2281, %v2280
      %v2305 = vpack.c.b16 %v2283, %v2282
      %v2306 = vpack.c.b16 %v2285, %v2284
      %v2307 = vpack.c.b16 %v2287, %v2286
      %v2308 = vpack.c.b16 %v2289, %v2288
      %v2309 = vpack.c.b16 %v2291, %v2290
      %v2310 = vpack.c.b16 %v2293, %v2292
      %v2311 = vpack.c.b16 %v2295, %v2294
      %v2317 = vunpack.c.l.b16 %v2223
      %v2318 = vunpack.c.l.b16 %v2224
      %v2319 = vunpack.c.l.b16 %v2225
      %v2320 = vunpack.c.l.b16 %v2226
      %v2321 = vunpack.c.l.b16 %v2227
      %v2322 = vpack.c.b16 %v2318, %v2317
      %v2323 = vpack.c.b16 %v2320, %v2319
      %v2324 = vpack.c.b16 %v2321, %v2321
      %vm2327 = vcmask 293888
      %v2329 = vsel %vm2327, %v2296, 0
      %v2332 = vsel %vm2327, %v2297, 0
      %v2335 = vsel %vm2327, %v2298, 0
      %v2338 = vsel %vm2327, %v2299, 0
      %v2341 = vsel %vm2327, %v2300, 0
      %v2344 = vsel %vm2327, %v2301, 0
      %v2347 = vsel %vm2327, %v2302, 0
      %v2350 = vsel %vm2327, %v2303, 0
      %v2353 = vsel %vm2327, %v2304, 0
      %v2356 = vsel %vm2327, %v2305, 0
      %v2359 = vsel %vm2327, %v2306, 0
      %v2362 = vsel %vm2327, %v2307, 0
      %v2365 = vsel %vm2327, %v2308, 0
      %v2368 = vsel %vm2327, %v2309, 0
      %v2371 = vsel %vm2327, %v2310, 0
      %v2374 = vsel %vm2327, %v2311, 0
      %vm2376 = vcmask 1041408
      %v2378 = vsel %vm2376, %v2324, 0
      %2380 = vmatpush.bf16.msra.mxu0 0
      %2381 = vmatpush.bf16.msra.mxu0 0
      %2382 = vmatpush.bf16.msra.mxu0 0
      %2383 = vmatpush.bf16.msra.mxu0 0
      %2384 = vmatpush.bf16.msra.mxu0 0
      %2385 = vmatpush.bf16.msra.mxu0 %v2378
      %2386 = vmatpush.bf16.msra.mxu0 %v2323
      %2387 = vmatpush.bf16.msra.mxu0 %v2322
      %2388 = vmatmul.bf16.gmra.mxu0 %v2329
      %v2389 = vpop.f32.mrf.mxu0
      %v2390 = vadd.f32 %v2230, %v2389
      %v2391 = vpop.f32.mrf.mxu0
      %v2392 = vadd.f32 %v2230, %v2391
      %2393 = vmatmul.bf16.gmra.mxu0 %v2332
      %v2394 = vpop.f32.mrf.mxu0
      %v2395 = vadd.f32 %v2230, %v2394
      %v2396 = vpop.f32.mrf.mxu0
      %v2397 = vadd.f32 %v2230, %v2396
      %2398 = vmatmul.bf16.gmra.mxu0 %v2335
      %v2399 = vpop.f32.mrf.mxu0
      %v2400 = vadd.f32 %v2230, %v2399
      %v2401 = vpop.f32.mrf.mxu0
      %v2402 = vadd.f32 %v2230, %v2401
      %2403 = vmatmul.bf16.gmra.mxu0 %v2338
      %v2404 = vpop.f32.mrf.mxu0
      %v2405 = vadd.f32 %v2230, %v2404
      %v2406 = vpop.f32.mrf.mxu0
      %v2407 = vadd.f32 %v2230, %v2406
      %2408 = vmatmul.bf16.gmra.mxu0 %v2341
      %v2409 = vpop.f32.mrf.mxu0
      %v2410 = vadd.f32 %v2230, %v2409
      %v2411 = vpop.f32.mrf.mxu0
      %v2412 = vadd.f32 %v2230, %v2411
      %2413 = vmatmul.bf16.gmra.mxu0 %v2344
      %v2414 = vpop.f32.mrf.mxu0
      %v2415 = vadd.f32 %v2230, %v2414
      %v2416 = vpop.f32.mrf.mxu0
      %v2417 = vadd.f32 %v2230, %v2416
      %2418 = vmatmul.bf16.gmra.mxu0 %v2347
      %v2419 = vpop.f32.mrf.mxu0
      %v2420 = vadd.f32 %v2230, %v2419
      %v2421 = vpop.f32.mrf.mxu0
      %v2422 = vadd.f32 %v2230, %v2421
      %2423 = vmatmul.bf16.gmra.mxu0 %v2350
      %v2424 = vpop.f32.mrf.mxu0
      %v2425 = vadd.f32 %v2230, %v2424
      %v2426 = vpop.f32.mrf.mxu0
      %v2427 = vadd.f32 %v2230, %v2426
      %2428 = vmatmul.bf16.gmra.mxu0 %v2353
      %v2429 = vpop.f32.mrf.mxu0
      %v2430 = vadd.f32 %v2230, %v2429
      %v2431 = vpop.f32.mrf.mxu0
      %v2432 = vadd.f32 %v2230, %v2431
      %2433 = vmatmul.bf16.gmra.mxu0 %v2356
      %v2434 = vpop.f32.mrf.mxu0
      %v2435 = vadd.f32 %v2230, %v2434
      %v2436 = vpop.f32.mrf.mxu0
      %v2437 = vadd.f32 %v2230, %v2436
      %2438 = vmatmul.bf16.gmra.mxu0 %v2359
      %v2439 = vpop.f32.mrf.mxu0
      %v2440 = vadd.f32 %v2230, %v2439
      %v2441 = vpop.f32.mrf.mxu0
      %v2442 = vadd.f32 %v2230, %v2441
      %2443 = vmatmul.bf16.gmra.mxu0 %v2362
      %v2444 = vpop.f32.mrf.mxu0
      %v2445 = vadd.f32 %v2230, %v2444
      %v2446 = vpop.f32.mrf.mxu0
      %v2447 = vadd.f32 %v2230, %v2446
      %2448 = vmatmul.bf16.gmra.mxu0 %v2365
      %v2449 = vpop.f32.mrf.mxu0
      %v2450 = vadd.f32 %v2230, %v2449
      %v2451 = vpop.f32.mrf.mxu0
      %v2452 = vadd.f32 %v2230, %v2451
      %2453 = vmatmul.bf16.gmra.mxu0 %v2368
      %v2454 = vpop.f32.mrf.mxu0
      %v2455 = vadd.f32 %v2230, %v2454
      %v2456 = vpop.f32.mrf.mxu0
      %v2457 = vadd.f32 %v2230, %v2456
      %2458 = vmatmul.bf16.gmra.mxu0 %v2371
      %v2459 = vpop.f32.mrf.mxu0
      %v2460 = vadd.f32 %v2230, %v2459
      %v2461 = vpop.f32.mrf.mxu0
      %v2462 = vadd.f32 %v2230, %v2461
      %2463 = vmatmul.bf16.gmra.mxu0 %v2374
      %v2464 = vpop.f32.mrf.mxu0
      %v2465 = vadd.f32 %v2230, %v2464
      %v2466 = vpop.f32.mrf.mxu0
      %v2467 = vadd.f32 %v2230, %v2466
      %2468 = vdwg.mxu0
      %v2469 = vmin.f32 %v2390, 30.0
      %v2470 = vmin.f32 %v2392, 30.0
      %v2471 = vmin.f32 %v2395, 30.0
      %v2472 = vmin.f32 %v2397, 30.0
      %v2473 = vmin.f32 %v2400, 30.0
      %v2474 = vmin.f32 %v2402, 30.0
      %v2475 = vmin.f32 %v2405, 30.0
      %v2476 = vmin.f32 %v2407, 30.0
      %v2477 = vmin.f32 %v2410, 30.0
      %v2478 = vmin.f32 %v2412, 30.0
      %v2479 = vmin.f32 %v2415, 30.0
      %v2480 = vmin.f32 %v2417, 30.0
      %v2481 = vmin.f32 %v2420, 30.0
      %v2482 = vmin.f32 %v2422, 30.0
      %v2483 = vmin.f32 %v2425, 30.0
      %v2484 = vmin.f32 %v2427, 30.0
      %v2485 = vmin.f32 %v2430, 30.0
      %v2486 = vmin.f32 %v2432, 30.0
      %v2487 = vmin.f32 %v2435, 30.0
      %v2488 = vmin.f32 %v2437, 30.0
      %v2489 = vmin.f32 %v2440, 30.0
      %v2490 = vmin.f32 %v2442, 30.0
      %v2491 = vmin.f32 %v2445, 30.0
      %v2492 = vmin.f32 %v2447, 30.0
      %v2493 = vmin.f32 %v2450, 30.0
      %v2494 = vmin.f32 %v2452, 30.0
      %v2495 = vmin.f32 %v2455, 30.0
      %v2496 = vmin.f32 %v2457, 30.0
      %v2497 = vmin.f32 %v2460, 30.0
      %v2498 = vmin.f32 %v2462, 30.0
      %v2499 = vmin.f32 %v2465, 30.0
      %v2500 = vmin.f32 %v2467, 30.0
      %v2501 = vmul.f32 %v2469, 1.442695
      %v2502 = vpow.pop %v2501
      %v2503 = vmul.f32 %v2470, 1.442695
      %v2504 = vpow.pop %v2503
      %v2505 = vmul.f32 %v2471, 1.442695
      %v2506 = vpow.pop %v2505
      %v2507 = vmul.f32 %v2472, 1.442695
      %v2508 = vpow.pop %v2507
      %v2509 = vmul.f32 %v2473, 1.442695
      %v2510 = vpow.pop %v2509
      %v2511 = vmul.f32 %v2474, 1.442695
      %v2512 = vpow.pop %v2511
      %v2513 = vmul.f32 %v2475, 1.442695
      %v2514 = vpow.pop %v2513
      %v2515 = vmul.f32 %v2476, 1.442695
      %v2516 = vpow.pop %v2515
      %v2517 = vmul.f32 %v2477, 1.442695
      %v2518 = vpow.pop %v2517
      %v2519 = vmul.f32 %v2478, 1.442695
      %v2520 = vpow.pop %v2519
      %v2521 = vmul.f32 %v2479, 1.442695
      %v2522 = vpow.pop %v2521
      %v2523 = vmul.f32 %v2480, 1.442695
      %v2524 = vpow.pop %v2523
      %v2525 = vmul.f32 %v2481, 1.442695
      %v2526 = vpow.pop %v2525
      %v2527 = vmul.f32 %v2482, 1.442695
      %v2528 = vpow.pop %v2527
      %v2529 = vmul.f32 %v2483, 1.442695
      %v2530 = vpow.pop %v2529
      %v2531 = vmul.f32 %v2484, 1.442695
      %v2532 = vpow.pop %v2531
      %v2533 = vmul.f32 %v2485, 1.442695
      %v2534 = vpow.pop %v2533
      %v2535 = vmul.f32 %v2486, 1.442695
      %v2536 = vpow.pop %v2535
      %v2537 = vmul.f32 %v2487, 1.442695
      %v2538 = vpow.pop %v2537
      %v2539 = vmul.f32 %v2488, 1.442695
      %v2540 = vpow.pop %v2539
      %v2541 = vmul.f32 %v2489, 1.442695
      %v2542 = vpow.pop %v2541
      %v2543 = vmul.f32 %v2490, 1.442695
      %v2544 = vpow.pop %v2543
      %v2545 = vmul.f32 %v2491, 1.442695
      %v2546 = vpow.pop %v2545
      %v2547 = vmul.f32 %v2492, 1.442695
      %v2548 = vpow.pop %v2547
      %v2549 = vmul.f32 %v2493, 1.442695
      %v2550 = vpow.pop %v2549
      %v2551 = vmul.f32 %v2494, 1.442695
      %v2552 = vpow.pop %v2551
      %v2553 = vmul.f32 %v2495, 1.442695
      %v2554 = vpow.pop %v2553
      %v2555 = vmul.f32 %v2496, 1.442695
      %v2556 = vpow.pop %v2555
      %v2557 = vmul.f32 %v2497, 1.442695
      %v2558 = vpow.pop %v2557
      %v2559 = vmul.f32 %v2498, 1.442695
      %v2560 = vpow.pop %v2559
      %v2561 = vmul.f32 %v2499, 1.442695
      %v2562 = vpow.pop %v2561
      %v2563 = vmul.f32 %v2500, 1.442695
      %v2564 = vpow.pop %v2563
      %v2565 = vadd.f32 %v2502, 1.0
      %v2566 = vadd.f32 %v2504, 1.0
      %v2567 = vadd.f32 %v2506, 1.0
      %v2568 = vadd.f32 %v2508, 1.0
      %v2569 = vadd.f32 %v2510, 1.0
      %v2570 = vadd.f32 %v2512, 1.0
      %v2571 = vadd.f32 %v2514, 1.0
      %v2572 = vadd.f32 %v2516, 1.0
      %v2573 = vadd.f32 %v2518, 1.0
      %v2574 = vadd.f32 %v2520, 1.0
      %v2575 = vadd.f32 %v2522, 1.0
      %v2576 = vadd.f32 %v2524, 1.0
      %v2577 = vadd.f32 %v2526, 1.0
      %v2578 = vadd.f32 %v2528, 1.0
      %v2579 = vadd.f32 %v2530, 1.0
      %v2580 = vadd.f32 %v2532, 1.0
      %v2581 = vadd.f32 %v2534, 1.0
      %v2582 = vadd.f32 %v2536, 1.0
      %v2583 = vadd.f32 %v2538, 1.0
      %v2584 = vadd.f32 %v2540, 1.0
      %v2585 = vadd.f32 %v2542, 1.0
      %v2586 = vadd.f32 %v2544, 1.0
      %v2587 = vadd.f32 %v2546, 1.0
      %v2588 = vadd.f32 %v2548, 1.0
      %v2589 = vadd.f32 %v2550, 1.0
      %v2590 = vadd.f32 %v2552, 1.0
      %v2591 = vadd.f32 %v2554, 1.0
      %v2592 = vadd.f32 %v2556, 1.0
      %v2593 = vadd.f32 %v2558, 1.0
      %v2594 = vadd.f32 %v2560, 1.0
      %v2595 = vadd.f32 %v2562, 1.0
      %v2596 = vadd.f32 %v2564, 1.0
      %v2597 = vmul.f32 %v2565, %v2565
      %v2598 = vmul.f32 %v2566, %v2566
      %v2599 = vmul.f32 %v2567, %v2567
      %v2600 = vmul.f32 %v2568, %v2568
      %v2601 = vmul.f32 %v2569, %v2569
      %v2602 = vmul.f32 %v2570, %v2570
      %v2603 = vmul.f32 %v2571, %v2571
      %v2604 = vmul.f32 %v2572, %v2572
      %v2605 = vmul.f32 %v2573, %v2573
      %v2606 = vmul.f32 %v2574, %v2574
      %v2607 = vmul.f32 %v2575, %v2575
      %v2608 = vmul.f32 %v2576, %v2576
      %v2609 = vmul.f32 %v2577, %v2577
      %v2610 = vmul.f32 %v2578, %v2578
      %v2611 = vmul.f32 %v2579, %v2579
      %v2612 = vmul.f32 %v2580, %v2580
      %v2613 = vmul.f32 %v2581, %v2581
      %v2614 = vmul.f32 %v2582, %v2582
      %v2615 = vmul.f32 %v2583, %v2583
      %v2616 = vmul.f32 %v2584, %v2584
      %v2617 = vmul.f32 %v2585, %v2585
      %v2618 = vmul.f32 %v2586, %v2586
      %v2619 = vmul.f32 %v2587, %v2587
      %v2620 = vmul.f32 %v2588, %v2588
      %v2621 = vmul.f32 %v2589, %v2589
      %v2622 = vmul.f32 %v2590, %v2590
      %v2623 = vmul.f32 %v2591, %v2591
      %v2624 = vmul.f32 %v2592, %v2592
      %v2625 = vmul.f32 %v2593, %v2593
      %v2626 = vmul.f32 %v2594, %v2594
      %v2627 = vmul.f32 %v2595, %v2595
      %v2628 = vmul.f32 %v2596, %v2596
      %v2629 = vsub.f32 %v2597, 1.0
      %v2630 = vsub.f32 %v2598, 1.0
      %v2631 = vsub.f32 %v2599, 1.0
      %v2632 = vsub.f32 %v2600, 1.0
      %v2633 = vsub.f32 %v2601, 1.0
      %v2634 = vsub.f32 %v2602, 1.0
      %v2635 = vsub.f32 %v2603, 1.0
      %v2636 = vsub.f32 %v2604, 1.0
      %v2637 = vsub.f32 %v2605, 1.0
      %v2638 = vsub.f32 %v2606, 1.0
      %v2639 = vsub.f32 %v2607, 1.0
      %v2640 = vsub.f32 %v2608, 1.0
      %v2641 = vsub.f32 %v2609, 1.0
      %v2642 = vsub.f32 %v2610, 1.0
      %v2643 = vsub.f32 %v2611, 1.0
      %v2644 = vsub.f32 %v2612, 1.0
      %v2645 = vsub.f32 %v2613, 1.0
      %v2646 = vsub.f32 %v2614, 1.0
      %v2647 = vsub.f32 %v2615, 1.0
      %v2648 = vsub.f32 %v2616, 1.0
      %v2649 = vsub.f32 %v2617, 1.0
      %v2650 = vsub.f32 %v2618, 1.0
      %v2651 = vsub.f32 %v2619, 1.0
      %v2652 = vsub.f32 %v2620, 1.0
      %v2653 = vsub.f32 %v2621, 1.0
      %v2654 = vsub.f32 %v2622, 1.0
      %v2655 = vsub.f32 %v2623, 1.0
      %v2656 = vsub.f32 %v2624, 1.0
      %v2657 = vsub.f32 %v2625, 1.0
      %v2658 = vsub.f32 %v2626, 1.0
      %v2659 = vsub.f32 %v2627, 1.0
      %v2660 = vsub.f32 %v2628, 1.0
      %v2661 = vmul.f32 %v2390, %v2629
      %v2662 = vmul.f32 %v2392, %v2630
      %v2663 = vmul.f32 %v2395, %v2631
      %v2664 = vmul.f32 %v2397, %v2632
      %v2665 = vmul.f32 %v2400, %v2633
      %v2666 = vmul.f32 %v2402, %v2634
      %v2667 = vmul.f32 %v2405, %v2635
      %v2668 = vmul.f32 %v2407, %v2636
      %v2669 = vmul.f32 %v2410, %v2637
      %v2670 = vmul.f32 %v2412, %v2638
      %v2671 = vmul.f32 %v2415, %v2639
      %v2672 = vmul.f32 %v2417, %v2640
      %v2673 = vmul.f32 %v2420, %v2641
      %v2674 = vmul.f32 %v2422, %v2642
      %v2675 = vmul.f32 %v2425, %v2643
      %v2676 = vmul.f32 %v2427, %v2644
      %v2677 = vmul.f32 %v2430, %v2645
      %v2678 = vmul.f32 %v2432, %v2646
      %v2679 = vmul.f32 %v2435, %v2647
      %v2680 = vmul.f32 %v2437, %v2648
      %v2681 = vmul.f32 %v2440, %v2649
      %v2682 = vmul.f32 %v2442, %v2650
      %v2683 = vmul.f32 %v2445, %v2651
      %v2684 = vmul.f32 %v2447, %v2652
      %v2685 = vmul.f32 %v2450, %v2653
      %v2686 = vmul.f32 %v2452, %v2654
      %v2687 = vmul.f32 %v2455, %v2655
      %v2688 = vmul.f32 %v2457, %v2656
      %v2689 = vmul.f32 %v2460, %v2657
      %v2690 = vmul.f32 %v2462, %v2658
      %v2691 = vmul.f32 %v2465, %v2659
      %v2692 = vmul.f32 %v2467, %v2660
      %v2693 = vadd.f32 %v2597, 1.0
      %v2694 = vadd.f32 %v2598, 1.0
      %v2695 = vadd.f32 %v2599, 1.0
      %v2696 = vadd.f32 %v2600, 1.0
      %v2697 = vadd.f32 %v2601, 1.0
      %v2698 = vadd.f32 %v2602, 1.0
      %v2699 = vadd.f32 %v2603, 1.0
      %v2700 = vadd.f32 %v2604, 1.0
      %v2701 = vadd.f32 %v2605, 1.0
      %v2702 = vadd.f32 %v2606, 1.0
      %v2703 = vadd.f32 %v2607, 1.0
      %v2704 = vadd.f32 %v2608, 1.0
      %v2705 = vadd.f32 %v2609, 1.0
      %v2706 = vadd.f32 %v2610, 1.0
      %v2707 = vadd.f32 %v2611, 1.0
      %v2708 = vadd.f32 %v2612, 1.0
      %v2709 = vadd.f32 %v2613, 1.0
      %v2710 = vadd.f32 %v2614, 1.0
      %v2711 = vadd.f32 %v2615, 1.0
      %v2712 = vadd.f32 %v2616, 1.0
      %v2713 = vadd.f32 %v2617, 1.0
      %v2714 = vadd.f32 %v2618, 1.0
      %v2715 = vadd.f32 %v2619, 1.0
      %v2716 = vadd.f32 %v2620, 1.0
      %v2717 = vadd.f32 %v2621, 1.0
      %v2718 = vadd.f32 %v2622, 1.0
      %v2719 = vadd.f32 %v2623, 1.0
      %v2720 = vadd.f32 %v2624, 1.0
      %v2721 = vadd.f32 %v2625, 1.0
      %v2722 = vadd.f32 %v2626, 1.0
      %v2723 = vadd.f32 %v2627, 1.0
      %v2724 = vadd.f32 %v2628, 1.0
      %v2725 = vrcp.pop %v2693
      %v2726 = vrcp.pop %v2694
      %v2727 = vrcp.pop %v2695
      %v2728 = vrcp.pop %v2696
      %v2729 = vrcp.pop %v2697
      %v2730 = vrcp.pop %v2698
      %v2731 = vrcp.pop %v2699
      %v2732 = vrcp.pop %v2700
      %v2733 = vrcp.pop %v2701
      %v2734 = vrcp.pop %v2702
      %v2735 = vrcp.pop %v2703
      %v2736 = vrcp.pop %v2704
      %v2737 = vrcp.pop %v2705
      %v2738 = vrcp.pop %v2706
      %v2739 = vrcp.pop %v2707
      %v2740 = vrcp.pop %v2708
      %v2741 = vrcp.pop %v2709
      %v2742 = vrcp.pop %v2710
      %v2743 = vrcp.pop %v2711
      %v2744 = vrcp.pop %v2712
      %v2745 = vrcp.pop %v2713
      %v2746 = vrcp.pop %v2714
      %v2747 = vrcp.pop %v2715
      %v2748 = vrcp.pop %v2716
      %v2749 = vrcp.pop %v2717
      %v2750 = vrcp.pop %v2718
      %v2751 = vrcp.pop %v2719
      %v2752 = vrcp.pop %v2720
      %v2753 = vrcp.pop %v2721
      %v2754 = vrcp.pop %v2722
      %v2755 = vrcp.pop %v2723
      %v2756 = vrcp.pop %v2724
      %v2757 = vmul.f32 %v2661, %v2725
      %v2758 = vmul.f32 %v2662, %v2726
      %v2759 = vmul.f32 %v2663, %v2727
      %v2760 = vmul.f32 %v2664, %v2728
      %v2761 = vmul.f32 %v2665, %v2729
      %v2762 = vmul.f32 %v2666, %v2730
      %v2763 = vmul.f32 %v2667, %v2731
      %v2764 = vmul.f32 %v2668, %v2732
      %v2765 = vmul.f32 %v2669, %v2733
      %v2766 = vmul.f32 %v2670, %v2734
      %v2767 = vmul.f32 %v2671, %v2735
      %v2768 = vmul.f32 %v2672, %v2736
      %v2769 = vmul.f32 %v2673, %v2737
      %v2770 = vmul.f32 %v2674, %v2738
      %v2771 = vmul.f32 %v2675, %v2739
      %v2772 = vmul.f32 %v2676, %v2740
      %v2773 = vmul.f32 %v2677, %v2741
      %v2774 = vmul.f32 %v2678, %v2742
      %v2775 = vmul.f32 %v2679, %v2743
      %v2776 = vmul.f32 %v2680, %v2744
      %v2777 = vmul.f32 %v2681, %v2745
      %v2778 = vmul.f32 %v2682, %v2746
      %v2779 = vmul.f32 %v2683, %v2747
      %v2780 = vmul.f32 %v2684, %v2748
      %v2781 = vmul.f32 %v2685, %v2749
      %v2782 = vmul.f32 %v2686, %v2750
      %v2783 = vmul.f32 %v2687, %v2751
      %v2784 = vmul.f32 %v2688, %v2752
      %v2785 = vmul.f32 %v2689, %v2753
      %v2786 = vmul.f32 %v2690, %v2754
      %v2787 = vmul.f32 %v2691, %v2755
      %v2788 = vmul.f32 %v2692, %v2756
      %vm2789 = vcmask 64512
      %2790 = vst.msk [vmem:[%s170] sm:$0xff] %vm2789, %v2757
      %2791 = vst.msk [vmem:[%s170 + $0x8] sm:$0xff] %vm2789, %v2758
      %2792 = vst.msk [vmem:[%s170 + $0x10] sm:$0xff] %vm2789, %v2759
      %2793 = vst.msk [vmem:[%s170 + $0x18] sm:$0xff] %vm2789, %v2760
      %2794 = vst.msk [vmem:[%s170 + $0x20] sm:$0xff] %vm2789, %v2761
      %2795 = vst.msk [vmem:[%s170 + $0x28] sm:$0xff] %vm2789, %v2762
      %2796 = vst.msk [vmem:[%s170 + $0x30] sm:$0xff] %vm2789, %v2763
      %2797 = vst.msk [vmem:[%s170 + $0x38] sm:$0xff] %vm2789, %v2764
      %2798 = vst.msk [vmem:[%s170 + $0x40] sm:$0xff] %vm2789, %v2765
      %2799 = vst.msk [vmem:[%s170 + $0x48] sm:$0xff] %vm2789, %v2766
      %2800 = vst.msk [vmem:[%s170 + $0x50] sm:$0xff] %vm2789, %v2767
      %2801 = vst.msk [vmem:[%s170 + $0x58] sm:$0xff] %vm2789, %v2768
      %2802 = vst.msk [vmem:[%s170 + $0x60] sm:$0xff] %vm2789, %v2769
      %2803 = vst.msk [vmem:[%s170 + $0x68] sm:$0xff] %vm2789, %v2770
      %2804 = vst.msk [vmem:[%s170 + $0x70] sm:$0xff] %vm2789, %v2771
      %2805 = vst.msk [vmem:[%s170 + $0x78] sm:$0xff] %vm2789, %v2772
      %2806 = vst.msk [vmem:[%s170 + $0x80] sm:$0xff] %vm2789, %v2773
      %2807 = vst.msk [vmem:[%s170 + $0x88] sm:$0xff] %vm2789, %v2774
      %2808 = vst.msk [vmem:[%s170 + $0x90] sm:$0xff] %vm2789, %v2775
      %2809 = vst.msk [vmem:[%s170 + $0x98] sm:$0xff] %vm2789, %v2776
      %2810 = vst.msk [vmem:[%s170 + $0xa0] sm:$0xff] %vm2789, %v2777
      %2811 = vst.msk [vmem:[%s170 + $0xa8] sm:$0xff] %vm2789, %v2778
      %2812 = vst.msk [vmem:[%s170 + $0xb0] sm:$0xff] %vm2789, %v2779
      %2813 = vst.msk [vmem:[%s170 + $0xb8] sm:$0xff] %vm2789, %v2780
      %2814 = vst.msk [vmem:[%s170 + $0xc0] sm:$0xff] %vm2789, %v2781
      %2815 = vst.msk [vmem:[%s170 + $0xc8] sm:$0xff] %vm2789, %v2782
      %2816 = vst.msk [vmem:[%s170 + $0xd0] sm:$0xff] %vm2789, %v2783
      %2817 = vst.msk [vmem:[%s170 + $0xd8] sm:$0xff] %vm2789, %v2784
      %2818 = vst.msk [vmem:[%s170 + $0xe0] sm:$0xff] %vm2789, %v2785
      %2819 = vst.msk [vmem:[%s170 + $0xe8] sm:$0xff] %vm2789, %v2786
      %2820 = vst.msk [vmem:[%s170 + $0xf0] sm:$0xff] %vm2789, %v2787
      %2821 = vst.msk [vmem:[%s170 + $0xf8] sm:$0xff] %vm2789, %v2788
      %p2822 = scmp.lt.s32.totalorder %s14, 1
      %s2823 = scalar_select %p2822, %s14, 1
      %s2824 = smul.addr %s2823, 32
      %s2825 = smul.addr %s2824, 8
      %s2826 = scalar_lea.vmem %s3, %s2825
      // Predicated region
      $region33: #{tpu_custom_call.1} parent=31 // pred_check
        %p2827 = pneg %p100
      $region34: #{tpu_custom_call.1} parent=31 // pred_check_branch
        %2829 = sbr.rel (%p2827) target = $region36
      $region35: #{tpu_custom_call.1} parent=31 // pred_region
        _
      $region36: #{tpu_custom_call.1} parent=31 // pred_fallthru
        _
    $region32: #{tpu_custom_call.1} parent=5 // pred_fallthru
      _
    %p2830 = scmp.le.s32.totalorder 2, %s9
    // Predicated region
    $region37: #{tpu_custom_call.1} parent=5 // pred_check
      %p2831 = pneg %p2830
    $region38: #{tpu_custom_call.1} parent=5 // pred_check_branch
      %2833 = sbr.rel (%p2831) target = $region40
    $region39: #{tpu_custom_call.1} parent=5 // pred_region
      %s2834 = ssub.s32 %s9, 2
      // Predicated region
      $region41: #{tpu_custom_call.1} parent=39 // pred_check
        %p2835 = pneg %p106
      $region42: #{tpu_custom_call.1} parent=39 // pred_check_branch
        %2837 = sbr.rel (%p2835) target = $region44
      $region43: #{tpu_custom_call.1} parent=39 // pred_region
        %p2838 = scmp.lt.s32.totalorder %s15, 1
        %s2839 = scalar_select %p2838, %s15, 1
        %s2840 = smul.addr %s2839, 32
        %s2841 = smul.addr %s2840, 8
        %s2842 = scalar_lea.vmem %s3, %s2841
      $region44: #{tpu_custom_call.1} parent=39 // pred_fallthru
        _
    $region40: #{tpu_custom_call.1} parent=5 // pred_fallthru
      _
  $region6: #{tpu_custom_call.1} parent=0 // loop_footer
    %s13 = sadd.s32 1, %s9
  $region7: #{tpu_custom_call.1} parent=0 // loop_footer_branch
    %8 = sbr.rel target = $region3
  $region8: #{tpu_custom_call.1} parent=0 // loop_exit
    _

</llo_original>
